<compile_context>
chip_gen: v6e
topology: v6e:2x2x1
jax: 0.10.0
libtpu: 0.0.40
codegen_flags: <defaults>
</compile_context>

<pallas_src>
import functools

import jax
import jax.numpy as jnp
from jax import lax
from jax.experimental import pallas as pl
from jax.experimental.pallas import tpu as pltpu


def _round_up(v, m):
    return ((v + m - 1) // m) * m


def _atrous_kernel(x_hbm, w1_ref, b1_ref, w2_ref, b2_ref, w3_ref, b3_ref,
                   o_ref, xbuf, sem, *, TH, W, rate, Cp, NCp):
    """One grid step = one (batch image, row tile).

    x_hbm : (N, H+2r, W+2r, Cp)   full zero-padded NHWC input, left in HBM
    w1_ref: (9*Cp, Cp)            im2col-flattened dilated 3x3 weights (bf16/f32)
    b1_ref: (1, Cp)    f32
    w2_ref: (Cp, Cp)              1x1 conv weights
    b2_ref: (1, Cp)    f32
    w3_ref: (Cp, NCp)             1x1 conv weights (to padded num_classes)
    b3_ref: (1, NCp)   f32
    o_ref : (1, TH, W, NCp)       lane-dense NHWC output tile (f32)
    xbuf  : (2, TH+2r, W+2r, Cp)  VMEM double buffer for the halo'd row window
    sem   : DMA semaphores, one per buffer slot
    """
    n = pl.program_id(0)
    r = pl.program_id(1)
    R = pl.num_programs(1)
    slot = lax.rem(r, 2)
    halo_rows = TH + 2 * rate

    def copy_in(tile_idx, dst_slot):
        return pltpu.make_async_copy(
            x_hbm.at[n, pl.ds(tile_idx * TH, halo_rows)],
            xbuf.at[dst_slot],
            sem.at[dst_slot],
        )

    # Prologue: first row tile of this image.
    @pl.when(r == 0)
    def _():
        copy_in(0, 0).start()

    # Wait for the current row tile.
    copy_in(r, slot).wait()

    # Prefetch the next row tile of the SAME image into the other slot
    # (guarded, so no dangling DMA at the end of an image / of the grid).
    @pl.when(r + 1 < R)
    def _():
        copy_in(r + 1, 1 - slot).start()

    window = xbuf[slot]                      # (halo_rows, Wp, Cp)

    # ---- dilated 3x3 conv as a single big-K matmul (im2col of 9 taps) ----
    patches = []
    for ky in range(3):
        for kx in range(3):
            patches.append(window[ky * rate: ky * rate + TH,
                                  kx * rate: kx * rate + W, :])   # (TH, W, Cp)
    im2col = jnp.concatenate(patches, axis=-1).reshape(TH * W, 9 * Cp)

    acc = jnp.dot(im2col, w1_ref[...], preferred_element_type=jnp.float32)
    h1 = jnp.maximum(acc + b1_ref[...], 0.0)                      # f32, ReLU

    # ---- 1x1 conv + ReLU ----
    h2 = jnp.dot(h1.astype(w2_ref.dtype), w2_ref[...],
                 preferred_element_type=jnp.float32)
    h2 = jnp.maximum(h2 + b2_ref[...], 0.0)

    # ---- final 1x1 conv to (padded) num_classes ----
    out = jnp.dot(h2.astype(w3_ref.dtype), w3_ref[...],
                  preferred_element_type=jnp.float32)
    out = out + b3_ref[...]

    o_ref[...] = out.reshape(1, TH, W, NCp).astype(o_ref.dtype)


def atrous_module_2(x_nchw, params, rate, *, row_tile=8,
                    compute_dtype=jnp.bfloat16):
    """Forward pass matching the PyTorch module. x_nchw: (N, C, H, W)."""
    w1, b1, w2, b2, w3, b3 = params
    N, C, H, W = x_nchw.shape
    NC = w3.shape[1]

    Cp = _round_up(C, 128)        # channel axis padded to fill 128 lanes
    NCp = _round_up(NC, 128)      # lane-dense output stores

    TH = row_tile if (H % row_tile == 0) else H
    R = H // TH
    Hp, Wp = H + 2 * rate, W + 2 * rate

    # glue: NCHW -> NHWC, spatial halo pad by `rate`, channel pad to Cp.
    x_nhwc = jnp.transpose(x_nchw, (0, 2, 3, 1))
    x_pad = jnp.pad(
        x_nhwc, ((0, 0), (rate, rate), (rate, rate), (0, Cp - C))
    ).astype(compute_dtype)

    # Weights: zero-pad channels; w1 flattened to im2col order (ky, kx, cin).
    w1p = jnp.pad(w1, ((0, 0), (0, 0), (0, Cp - C), (0, Cp - C)))
    w1p = w1p.reshape(9 * Cp, Cp).astype(compute_dtype)
    b1p = jnp.pad(b1, ((0, 0), (0, Cp - C))).astype(jnp.float32)
    w2p = jnp.pad(w2, ((0, Cp - C), (0, Cp - C))).astype(compute_dtype)
    b2p = jnp.pad(b2, ((0, 0), (0, Cp - C))).astype(jnp.float32)
    w3p = jnp.pad(w3, ((0, Cp - C), (0, NCp - NC))).astype(compute_dtype)
    b3p = jnp.pad(b3, ((0, 0), (0, NCp - NC))).astype(jnp.float32)

    kernel = functools.partial(_atrous_kernel, TH=TH, W=W, rate=rate,
                               Cp=Cp, NCp=NCp)

    out_nhwc = pl.pallas_call(
        kernel,
        out_shape=jax.ShapeDtypeStruct((N, H, W, NCp), jnp.float32),
        grid_spec=pltpu.PrefetchScalarGridSpec(
            num_scalar_prefetch=0,
            grid=(N, R),
            in_specs=[
                pl.BlockSpec(memory_space=pl.ANY),              # x stays in HBM
                pl.BlockSpec((9 * Cp, Cp), lambda n, r: (0, 0)),  # resident
                pl.BlockSpec((1, Cp),      lambda n, r: (0, 0)),
                pl.BlockSpec((Cp, Cp),     lambda n, r: (0, 0)),
                pl.BlockSpec((1, Cp),      lambda n, r: (0, 0)),
                pl.BlockSpec((Cp, NCp),    lambda n, r: (0, 0)),
                pl.BlockSpec((1, NCp),     lambda n, r: (0, 0)),
            ],
            out_specs=pl.BlockSpec((1, TH, W, NCp), lambda n, r: (n, r, 0, 0)),
            scratch_shapes=[
                pltpu.VMEM((2, TH + 2 * rate, Wp, Cp), compute_dtype),
                pltpu.SemaphoreType.DMA((2,)),
            ],
        ),
        compiler_params=pltpu.CompilerParams(
            dimension_semantics=("parallel", "arbitrary"),
            vmem_limit_bytes=48 * 1024 * 1024,
        ),
    )(x_pad, w1p, b1p, w2p, b2p, w3p, b3p)

    # glue: strip channel padding, NHWC -> NCHW (PyTorch convention).
    return jnp.transpose(out_nhwc[..., :NC], (0, 3, 1, 2))


def init_params(key, inplanes, num_classes):
    """Deterministic kaiming-normal weights, zero biases (as in _init_parameters)."""
    planes = inplanes
    k1, k2, k3 = jax.random.split(key, 3)

    def kaiming(k, shape, fan_in):
        std = (2.0 / fan_in) ** 0.5
        return std * jax.random.normal(k, shape, dtype=jnp.float32)

    # conv1: 3x3 dilated, stored as (ky, kx, Cin, Cout)
    w1 = kaiming(k1, (3, 3, inplanes, planes), fan_in=inplanes * 3 * 3)
    b1 = jnp.zeros((1, planes), dtype=jnp.float32)
    # conv2: 1x1, stored as (Cin, Cout)
    w2 = kaiming(k2, (planes, planes), fan_in=planes * 1 * 1)
    b2 = jnp.zeros((1, planes), dtype=jnp.float32)
    # conv3: 1x1 -> num_classes
    w3 = kaiming(k3, (planes, num_classes), fan_in=planes * 1 * 1)
    b3 = jnp.zeros((1, num_classes), dtype=jnp.float32)
    return (w1, b1, w2, b2, w3, b3)


def _reference(x_nchw, params, rate):
    """Pure-JAX reference (lax conv) for a correctness check."""
    w1, b1, w2, b2, w3, b3 = params
    w1_oihw = jnp.transpose(w1, (3, 2, 0, 1))
    y = lax.conv_general_dilated(
        x_nchw, w1_oihw, window_strides=(1, 1),
        padding=((rate, rate), (rate, rate)), rhs_dilation=(rate, rate),
        dimension_numbers=("NCHW", "OIHW", "NCHW"))
    y = jnp.maximum(y + b1.reshape(1, -1, 1, 1), 0.0)
    y = jnp.einsum("nchw,cd->ndhw", y, w2) + b2.reshape(1, -1, 1, 1)
    y = jnp.maximum(y, 0.0)
    y = jnp.einsum("nchw,cd->ndhw", y, w3) + b3.reshape(1, -1, 1, 1)
    return y


if __name__ == "__main__":
    N, C, H, W = 2, 8, 16, 16
    num_classes = 4
    rate = 2

    key = jax.random.PRNGKey(0)
    kx, kp = jax.random.split(key)
    x = jax.random.normal(kx, (N, C, H, W), dtype=jnp.float32)
    params = init_params(kp, C, num_classes)

    ref = _reference(x, params, rate)

    # 1) f32 compute path: tight structural/numerical check vs lax reference.
    out_f32 = jax.block_until_ready(
        atrous_module_2(x, params, rate, row_tile=8, compute_dtype=jnp.float32))
    assert out_f32.shape == (N, num_classes, H, W)
    assert jnp.allclose(out_f32, ref, atol=5e-4, rtol=5e-4), "f32 mismatch vs reference"

    # 2) bf16 MXU path (the performance configuration): loose sanity check.
    out_bf16 = jax.block_until_ready(
        atrous_module_2(x, params, rate, row_tile=8, compute_dtype=jnp.bfloat16))
    assert out_bf16.shape == (N, num_classes, H, W)
    assert jnp.allclose(out_bf16, ref, atol=1e-1, rtol=1e-1), "bf16 mismatch vs reference"

    print("KERNEL_OK")
</pallas_src>

<mosaic_0001>
module attributes {stable_mosaic.version = 11 : i64} {
  func.func @_atrous_kernel(%arg0: i32, %arg1: i32, %arg2: memref<2x20x20x128xf32, #tpu.memory_space<any>>, %arg3: memref<1152x128xf32, #tpu.memory_space<vmem>>, %arg4: memref<1x128xf32, #tpu.memory_space<vmem>>, %arg5: memref<128x128xf32, #tpu.memory_space<vmem>>, %arg6: memref<1x128xf32, #tpu.memory_space<vmem>>, %arg7: memref<128x128xf32, #tpu.memory_space<vmem>>, %arg8: memref<1x128xf32, #tpu.memory_space<vmem>>, %arg9: memref<1x8x16x128xf32, #tpu.memory_space<vmem>>, %arg10: memref<2x12x20x128xf32, #tpu.memory_space<vmem>>, %arg11: memref<2x!tpu.dma_semaphore, #tpu.memory_space<semaphore_mem>>) attributes {dimension_semantics = [#tpu.dimension_semantics<parallel>, #tpu.dimension_semantics<arbitrary>], iteration_bounds = array<i64: 2, 2>, scalar_prefetch = 0 : i64, scratch_operands = 2 : i64, tpu.core_type = #tpu.core_type<tc>, window_params = [{}, {pipeline_mode = #tpu.pipeline_mode<synchronous>, transform_indices = @transform_1, window_bounds = array<i64: 1152, 128>}, {pipeline_mode = #tpu.pipeline_mode<synchronous>, transform_indices = @transform_2, window_bounds = array<i64: 1, 128>}, {pipeline_mode = #tpu.pipeline_mode<synchronous>, transform_indices = @transform_3, window_bounds = array<i64: 128, 128>}, {pipeline_mode = #tpu.pipeline_mode<synchronous>, transform_indices = @transform_4, window_bounds = array<i64: 1, 128>}, {pipeline_mode = #tpu.pipeline_mode<synchronous>, transform_indices = @transform_5, window_bounds = array<i64: 128, 128>}, {pipeline_mode = #tpu.pipeline_mode<synchronous>, transform_indices = @transform_6, window_bounds = array<i64: 1, 128>}, {transform_indices = @transform_7, window_bounds = array<i64: 1, 8, 16, 128>}]} {
    %c2_i32 = arith.constant 2 : i32
    %0 = arith.remsi %arg1, %c2_i32 : i32
    %c0_i32 = arith.constant 0 : i32
    %1 = arith.cmpi eq, %arg1, %c0_i32 : i32
    %2 = arith.extui %1 : i1 to i32
    %c0_i32_0 = arith.constant 0 : i32
    %3 = arith.cmpi ne, %2, %c0_i32_0 : i32
    scf.if %3 {
      %c0_i32_30 = arith.constant 0 : i32
      %c0_i32_31 = arith.constant 0 : i32
      %c0_i32_32 = arith.constant 0 : i32
      %c0_i32_33 = arith.constant 0 : i32
      %c0_i32_34 = arith.constant 0 : i32
      %50 = tpu.memref_slice %arg2[%arg0, %c0_i32_32, %c0_i32_33, %c0_i32_34] : memref<2x20x20x128xf32, #tpu.memory_space<any>> -> memref<1x12x20x128xf32, #tpu.memory_space<any>>
      %51 = tpu.memref_squeeze %50 : memref<1x12x20x128xf32, #tpu.memory_space<any>> -> memref<12x20x128xf32, #tpu.memory_space<any>>
      %c0_i32_35 = arith.constant 0 : i32
      %c0_i32_36 = arith.constant 0 : i32
      %c0_i32_37 = arith.constant 0 : i32
      %52 = tpu.memref_slice %arg10[%c0_i32_30, %c0_i32_35, %c0_i32_36, %c0_i32_37] : memref<2x12x20x128xf32, #tpu.memory_space<vmem>> -> memref<1x12x20x128xf32, #tpu.memory_space<vmem>>
      %53 = tpu.memref_squeeze %52 : memref<1x12x20x128xf32, #tpu.memory_space<vmem>> -> memref<12x20x128xf32, #tpu.memory_space<vmem>>
      %54 = tpu.memref_slice %arg11[%c0_i32_31] : memref<2x!tpu.dma_semaphore, #tpu.memory_space<semaphore_mem>> -> memref<1x!tpu.dma_semaphore, #tpu.memory_space<semaphore_mem>>
      %55 = tpu.memref_squeeze %54 : memref<1x!tpu.dma_semaphore, #tpu.memory_space<semaphore_mem>> -> memref<!tpu.dma_semaphore, #tpu.memory_space<semaphore_mem>>
      tpu.enqueue_dma source(%51 : memref<12x20x128xf32, #tpu.memory_space<any>>) target(%53 : memref<12x20x128xf32, #tpu.memory_space<vmem>>) target_semaphore(%55 : memref<!tpu.dma_semaphore, #tpu.memory_space<semaphore_mem>>)
    } else {
    }
    %c8_i32 = arith.constant 8 : i32
    %4 = arith.muli %arg1, %c8_i32 : i32
    %c0_i32_1 = arith.constant 0 : i32
    %c0_i32_2 = arith.constant 0 : i32
    %5 = tpu.memref_slice %arg2[%arg0, %4, %c0_i32_1, %c0_i32_2] : memref<2x20x20x128xf32, #tpu.memory_space<any>> -> memref<1x12x20x128xf32, #tpu.memory_space<any>>
    %6 = tpu.memref_squeeze %5 : memref<1x12x20x128xf32, #tpu.memory_space<any>> -> memref<12x20x128xf32, #tpu.memory_space<any>>
    %c0_i32_3 = arith.constant 0 : i32
    %c0_i32_4 = arith.constant 0 : i32
    %c0_i32_5 = arith.constant 0 : i32
    %7 = tpu.memref_slice %arg10[%0, %c0_i32_3, %c0_i32_4, %c0_i32_5] : memref<2x12x20x128xf32, #tpu.memory_space<vmem>> -> memref<1x12x20x128xf32, #tpu.memory_space<vmem>>
    %8 = tpu.memref_squeeze %7 : memref<1x12x20x128xf32, #tpu.memory_space<vmem>> -> memref<12x20x128xf32, #tpu.memory_space<vmem>>
    %9 = tpu.memref_slice %arg11[%0] : memref<2x!tpu.dma_semaphore, #tpu.memory_space<semaphore_mem>> -> memref<1x!tpu.dma_semaphore, #tpu.memory_space<semaphore_mem>>
    %10 = tpu.memref_squeeze %9 : memref<1x!tpu.dma_semaphore, #tpu.memory_space<semaphore_mem>> -> memref<!tpu.dma_semaphore, #tpu.memory_space<semaphore_mem>>
    tpu.wait_dma2 semaphore(%10 : memref<!tpu.dma_semaphore, #tpu.memory_space<semaphore_mem>>) src(%6 : memref<12x20x128xf32, #tpu.memory_space<any>>) dst(%8 : memref<12x20x128xf32, #tpu.memory_space<vmem>>)
    %c1_i32 = arith.constant 1 : i32
    %11 = arith.addi %arg1, %c1_i32 : i32
    %c2_i32_6 = arith.constant 2 : i32
    %12 = arith.cmpi slt, %11, %c2_i32_6 : i32
    %13 = arith.extui %12 : i1 to i32
    %c0_i32_7 = arith.constant 0 : i32
    %14 = arith.cmpi ne, %13, %c0_i32_7 : i32
    scf.if %14 {
      %c1_i32_30 = arith.constant 1 : i32
      %50 = arith.addi %arg1, %c1_i32_30 : i32
      %c1_i32_31 = arith.constant 1 : i32
      %51 = arith.subi %c1_i32_31, %0 : i32
      %c8_i32_32 = arith.constant 8 : i32
      %52 = arith.muli %50, %c8_i32_32 : i32
      %c0_i32_33 = arith.constant 0 : i32
      %c0_i32_34 = arith.constant 0 : i32
      %53 = tpu.memref_slice %arg2[%arg0, %52, %c0_i32_33, %c0_i32_34] : memref<2x20x20x128xf32, #tpu.memory_space<any>> -> memref<1x12x20x128xf32, #tpu.memory_space<any>>
      %54 = tpu.memref_squeeze %53 : memref<1x12x20x128xf32, #tpu.memory_space<any>> -> memref<12x20x128xf32, #tpu.memory_space<any>>
      %c0_i32_35 = arith.constant 0 : i32
      %c0_i32_36 = arith.constant 0 : i32
      %c0_i32_37 = arith.constant 0 : i32
      %55 = tpu.memref_slice %arg10[%51, %c0_i32_35, %c0_i32_36, %c0_i32_37] : memref<2x12x20x128xf32, #tpu.memory_space<vmem>> -> memref<1x12x20x128xf32, #tpu.memory_space<vmem>>
      %56 = tpu.memref_squeeze %55 : memref<1x12x20x128xf32, #tpu.memory_space<vmem>> -> memref<12x20x128xf32, #tpu.memory_space<vmem>>
      %57 = tpu.memref_slice %arg11[%51] : memref<2x!tpu.dma_semaphore, #tpu.memory_space<semaphore_mem>> -> memref<1x!tpu.dma_semaphore, #tpu.memory_space<semaphore_mem>>
      %58 = tpu.memref_squeeze %57 : memref<1x!tpu.dma_semaphore, #tpu.memory_space<semaphore_mem>> -> memref<!tpu.dma_semaphore, #tpu.memory_space<semaphore_mem>>
      tpu.enqueue_dma source(%54 : memref<12x20x128xf32, #tpu.memory_space<any>>) target(%56 : memref<12x20x128xf32, #tpu.memory_space<vmem>>) target_semaphore(%58 : memref<!tpu.dma_semaphore, #tpu.memory_space<semaphore_mem>>)
    } else {
    }
    %15 = arith.index_cast %0 : i32 to index
    %c0 = arith.constant 0 : index
    %c0_8 = arith.constant 0 : index
    %c0_9 = arith.constant 0 : index
    %16 = vector.load %arg10[%15, %c0, %c0_8, %c0_9] : memref<2x12x20x128xf32, #tpu.memory_space<vmem>>, vector<1x12x20x128xf32>
    %17 = vector.shape_cast %16 : vector<1x12x20x128xf32> to vector<12x20x128xf32>
    %18 = vector.extract_strided_slice %17 {offsets = [0, 0, 0], sizes = [8, 16, 128], strides = [1, 1, 1]} : vector<12x20x128xf32> to vector<8x16x128xf32>
    %19 = vector.extract_strided_slice %17 {offsets = [0, 2, 0], sizes = [8, 16, 128], strides = [1, 1, 1]} : vector<12x20x128xf32> to vector<8x16x128xf32>
    %20 = vector.extract_strided_slice %17 {offsets = [0, 4, 0], sizes = [8, 16, 128], strides = [1, 1, 1]} : vector<12x20x128xf32> to vector<8x16x128xf32>
    %21 = vector.extract_strided_slice %17 {offsets = [2, 0, 0], sizes = [8, 16, 128], strides = [1, 1, 1]} : vector<12x20x128xf32> to vector<8x16x128xf32>
    %22 = vector.extract_strided_slice %17 {offsets = [2, 2, 0], sizes = [8, 16, 128], strides = [1, 1, 1]} : vector<12x20x128xf32> to vector<8x16x128xf32>
    %23 = vector.extract_strided_slice %17 {offsets = [2, 4, 0], sizes = [8, 16, 128], strides = [1, 1, 1]} : vector<12x20x128xf32> to vector<8x16x128xf32>
    %24 = vector.extract_strided_slice %17 {offsets = [4, 0, 0], sizes = [8, 16, 128], strides = [1, 1, 1]} : vector<12x20x128xf32> to vector<8x16x128xf32>
    %25 = vector.extract_strided_slice %17 {offsets = [4, 2, 0], sizes = [8, 16, 128], strides = [1, 1, 1]} : vector<12x20x128xf32> to vector<8x16x128xf32>
    %26 = vector.extract_strided_slice %17 {offsets = [4, 4, 0], sizes = [8, 16, 128], strides = [1, 1, 1]} : vector<12x20x128xf32> to vector<8x16x128xf32>
    %27 = tpu.concatenate %18, %19, %20, %21, %22, %23, %24, %25, %26 in 2 : vector<8x16x128xf32>, vector<8x16x128xf32>, vector<8x16x128xf32>, vector<8x16x128xf32>, vector<8x16x128xf32>, vector<8x16x128xf32>, vector<8x16x128xf32>, vector<8x16x128xf32>, vector<8x16x128xf32> -> vector<8x16x1152xf32>
    %28 = vector.shape_cast %27 : vector<8x16x1152xf32> to vector<128x1152xf32>
    %c0_10 = arith.constant 0 : index
    %c0_11 = arith.constant 0 : index
    %29 = vector.load %arg3[%c0_10, %c0_11] : memref<1152x128xf32, #tpu.memory_space<vmem>>, vector<1152x128xf32>
    %cst = arith.constant dense<0.000000e+00> : vector<128x128xf32>
    %30 = tpu.matmul %28, %29, %cst {dimension_numbers = #tpu.dot_dimension_numbers<[1], [0], [0], [1], [0, 0, 1, 1], [], []>} : vector<128x1152xf32>, vector<1152x128xf32>, vector<128x128xf32> -> vector<128x128xf32>
    %c0_12 = arith.constant 0 : index
    %c0_13 = arith.constant 0 : index
    %31 = vector.load %arg4[%c0_12, %c0_13] : memref<1x128xf32, #tpu.memory_space<vmem>>, vector<1x128xf32>
    %32 = vector.broadcast %31 : vector<1x128xf32> to vector<128x128xf32>
    %33 = arith.addf %30, %32 : vector<128x128xf32>
    %cst_14 = arith.constant 0.000000e+00 : f32
    %34 = vector.broadcast %cst_14 : f32 to vector<128x128xf32>
    %35 = arith.maximumf %33, %34 : vector<128x128xf32>
    %c0_15 = arith.constant 0 : index
    %c0_16 = arith.constant 0 : index
    %36 = vector.load %arg5[%c0_15, %c0_16] : memref<128x128xf32, #tpu.memory_space<vmem>>, vector<128x128xf32>
    %cst_17 = arith.constant dense<0.000000e+00> : vector<128x128xf32>
    %37 = tpu.matmul %35, %36, %cst_17 {dimension_numbers = #tpu.dot_dimension_numbers<[1], [0], [0], [1], [0, 0, 1, 1], [], []>} : vector<128x128xf32>, vector<128x128xf32>, vector<128x128xf32> -> vector<128x128xf32>
    %c0_18 = arith.constant 0 : index
    %c0_19 = arith.constant 0 : index
    %38 = vector.load %arg6[%c0_18, %c0_19] : memref<1x128xf32, #tpu.memory_space<vmem>>, vector<1x128xf32>
    %39 = vector.broadcast %38 : vector<1x128xf32> to vector<128x128xf32>
    %40 = arith.addf %37, %39 : vector<128x128xf32>
    %cst_20 = arith.constant 0.000000e+00 : f32
    %41 = vector.broadcast %cst_20 : f32 to vector<128x128xf32>
    %42 = arith.maximumf %40, %41 : vector<128x128xf32>
    %c0_21 = arith.constant 0 : index
    %c0_22 = arith.constant 0 : index
    %43 = vector.load %arg7[%c0_21, %c0_22] : memref<128x128xf32, #tpu.memory_space<vmem>>, vector<128x128xf32>
    %cst_23 = arith.constant dense<0.000000e+00> : vector<128x128xf32>
    %44 = tpu.matmul %42, %43, %cst_23 {dimension_numbers = #tpu.dot_dimension_numbers<[1], [0], [0], [1], [0, 0, 1, 1], [], []>} : vector<128x128xf32>, vector<128x128xf32>, vector<128x128xf32> -> vector<128x128xf32>
    %c0_24 = arith.constant 0 : index
    %c0_25 = arith.constant 0 : index
    %45 = vector.load %arg8[%c0_24, %c0_25] : memref<1x128xf32, #tpu.memory_space<vmem>>, vector<1x128xf32>
    %46 = vector.broadcast %45 : vector<1x128xf32> to vector<128x128xf32>
    %47 = arith.addf %44, %46 : vector<128x128xf32>
    %48 = vector.shape_cast %47 : vector<128x128xf32> to vector<1x8x16x128xf32>
    %c0_26 = arith.constant 0 : index
    %c0_27 = arith.constant 0 : index
    %c0_28 = arith.constant 0 : index
    %c0_29 = arith.constant 0 : index
    %49 = vector.load %arg9[%c0_26, %c0_27, %c0_28, %c0_29] : memref<1x8x16x128xf32, #tpu.memory_space<vmem>>, vector<1x8x16x128xf32>
    tpu.vector_store %arg9[%c0_26, %c0_27, %c0_28, %c0_29], %48 {strides = array<i32>} : memref<1x8x16x128xf32, #tpu.memory_space<vmem>>, vector<1x8x16x128xf32>,
    return
  }
  func.func @transform_1(%arg0: i32, %arg1: i32) -> (i32, i32) {
    %c0_i32 = arith.constant 0 : i32
    %c0_i32_0 = arith.constant 0 : i32
    %c0_i32_1 = arith.constant 0 : i32
    return %c0_i32, %c0_i32_0 : i32, i32
  }
  func.func @transform_2(%arg0: i32, %arg1: i32) -> (i32, i32) {
    %c0_i32 = arith.constant 0 : i32
    %c0_i32_0 = arith.constant 0 : i32
    %c0_i32_1 = arith.constant 0 : i32
    return %c0_i32, %c0_i32_0 : i32, i32
  }
  func.func @transform_3(%arg0: i32, %arg1: i32) -> (i32, i32) {
    %c0_i32 = arith.constant 0 : i32
    %c0_i32_0 = arith.constant 0 : i32
    %c0_i32_1 = arith.constant 0 : i32
    return %c0_i32, %c0_i32_0 : i32, i32
  }
  func.func @transform_4(%arg0: i32, %arg1: i32) -> (i32, i32) {
    %c0_i32 = arith.constant 0 : i32
    %c0_i32_0 = arith.constant 0 : i32
    %c0_i32_1 = arith.constant 0 : i32
    return %c0_i32, %c0_i32_0 : i32, i32
  }
  func.func @transform_5(%arg0: i32, %arg1: i32) -> (i32, i32) {
    %c0_i32 = arith.constant 0 : i32
    %c0_i32_0 = arith.constant 0 : i32
    %c0_i32_1 = arith.constant 0 : i32
    return %c0_i32, %c0_i32_0 : i32, i32
  }
  func.func @transform_6(%arg0: i32, %arg1: i32) -> (i32, i32) {
    %c0_i32 = arith.constant 0 : i32
    %c0_i32_0 = arith.constant 0 : i32
    %c0_i32_1 = arith.constant 0 : i32
    return %c0_i32, %c0_i32_0 : i32, i32
  }
  func.func @transform_7(%arg0: i32, %arg1: i32) -> (i32, i32, i32, i32) {
    %c0_i32 = arith.constant 0 : i32
    %c0_i32_0 = arith.constant 0 : i32
    %c0_i32_1 = arith.constant 0 : i32
    return %arg0, %arg1, %c0_i32, %c0_i32_0 : i32, i32, i32, i32
  }
}

</mosaic_0001>

<llo_original>
// kernel: tpu_custom_call.1
$region0: #{tpu_custom_call.1}
  #allocation0 [shape = 'u32[]', space=smem, size = 0x4, offset = 0x4, fixed_abs, tag = 'smem constant byte address 0x4 - core index']
  #allocation1 [shape = 'u32[144,128]{1,0:T(1,128)}', space=vmem, size = 0x12000, scoped, tag = 'internal scratch']
  #allocation2 [shape = 'f32[2,12,20,128]{3,2,1,0:T(8,128)}', space=vmem, size = 0x48000, scoped, tag = 'scratch operand']
  #allocation3 [shape = 's32[2]{0}', space=sflag, size = 0x8, scoped, tag = 'scratch operand']
  #allocation6 [shape = 's32[]', space=sflag, size = 0x4, offset = 0, fixed_abs, tag = 'sflag constant byte address 0x0 - dummy sync flag']
  #allocation7 [shape = 's32[]', space=sflag, size = 0x4, offset = 0, fixed_abs, tag = 'sflag constant byte address 0x0 - dummy sync flag']
  %s0 = inlined_call_operand.vmem [shape: f32[2,20,20,128], index: 0, kind: input, shape index: {}]
  %s1 = inlined_call_operand.vmem [shape: f32[1152,128], index: 1, kind: input, shape index: {}]
  %s2 = inlined_call_operand.vmem [shape: f32[1,128], index: 2, kind: input, shape index: {}]
  %s3 = inlined_call_operand.vmem [shape: f32[128,128], index: 3, kind: input, shape index: {}]
  %s4 = inlined_call_operand.vmem [shape: f32[1,128], index: 4, kind: input, shape index: {}]
  %s5 = inlined_call_operand.vmem [shape: f32[128,128], index: 5, kind: input, shape index: {}]
  %s6 = inlined_call_operand.vmem [shape: f32[1,128], index: 6, kind: input, shape index: {}]
  %s7 = inlined_call_operand.hbm [shape: f32[2,16,16,128], index: 7, kind: output, shape index: {}]
  %s8 = sld [smem:[#allocation0]]
  $region139: #{tpu_custom_call.1} parent=0
    _
  %s10 = ssub.s32 1, %s8
  %s11 = scalar_select 0, %s10, %s8
  $region1: #{tpu_custom_call.1} parent=0
    #allocation4 [shape = 'u8[131072]{0}', space=vmem, size = 0x20000, scoped, tag = 'output window, operand 0']
    #allocation5 [shape = 's32[2]{0}', space=sflag, size = 0x8, scoped, tag = 'scoped memory for tpu_custom_call.1']
    %12 = vsyncpa [#allocation5], 0
    %s13 = scalar_lea.sflag [#allocation5], 1
    %14 = vsyncpa %s13, 0
    loop: start=0, step=1, limit=6
    $region2: #{tpu_custom_call.1} parent=1 // loop_pre_header
      _
    $region3: #{tpu_custom_call.1} parent=1 // loop_header
      %s16 = sphi 0, %s20
      %p17 = scmp.ge.s32.totalorder %s16, 6
      %s23 = sphi 0, %s35
      %s24 = sphi 0, %s31
      %s25 = sphi 0, %s23
      %s26 = sphi 0, %s24
      %s27 = sphi 0, %s25
      %s28 = sphi 0, %s26
      %s36 = sphi 0, %s36
      %s38 = sphi 0, %s36
      %s39 = sphi 0, %s38
      %s53 = sphi 0, %s39
      %s57 = sphi 0, %s57
      %s59 = sphi 0, %s57
      %s60 = sphi 0, %s59
      %s74 = sphi 0, %s60
      %s78 = sphi 0, %s78
      %s80 = sphi 0, %s78
      %s81 = sphi 0, %s80
      %s95 = sphi 0, %s81
      %s99 = sphi 0, %s99
      %s101 = sphi 0, %s99
      %s102 = sphi 0, %s101
      %s116 = sphi 0, %s102
      %s120 = sphi 0, %s120
      %s122 = sphi 0, %s120
      %s123 = sphi 0, %s122
      %s137 = sphi 0, %s123
      %s141 = sphi 0, %s141
      %s143 = sphi 0, %s141
      %s144 = sphi 0, %s143
      %s158 = sphi 0, %s144
      %s166 = sphi 0, %s168
      %s169 = sphi 0, %s166
      %s170 = sphi 0, %s169
      %s186 = sphi 0, %s170
    $region4: #{tpu_custom_call.1} parent=1 // loop_header_branch
      %19 = sbr.rel (%p17) target = $region8
    $region5: #{tpu_custom_call.1} parent=1 // loop_body
      %s21 = ssub.s32 %s16, 1
      %s22 = ssub.s32 %s16, 2
      %s29 = sadd.s32 1, %s24
      %p30 = scmp.ge.s32.totalorder %s29, 2
      %s31 = scalar_select %p30, 0, %s29
      %s32 = sadd.s32 1, %s23
      %s33 = scalar_select %p30, %s32, %s23
      %p34 = scmp.ge.s32.totalorder %s33, 2
      %s35 = scalar_select %p34, 0, %s33
      %s37 = sadd.s32 %s36, 1
      %p40 = scmp.eq.s32.totalorder %s16, 3
      %p41 = scmp.ne.s32.totalorder %s36, %s38
      %p42 = scmp.eq.s32.totalorder %s16, 0
      %p43 = por %p41, %p42
      %p44 = scmp.ne.s32.totalorder %s36, %s38
      %p45 = scmp.eq.s32.totalorder %s21, 3
      %p46 = por %p44, %p45
      %p47 = scmp.ne.s32.totalorder %s38, %s39
      %p48 = scmp.eq.s32.totalorder %s21, 0
      %p49 = por %p47, %p48
      %p50 = scmp.ne.s32.totalorder %s38, %s39
      %p51 = scmp.eq.s32.totalorder %s22, 3
      %p52 = por %p50, %p51
      %p54 = scmp.ne.s32.totalorder %s39, %s53
      %p55 = scmp.eq.s32.totalorder %s22, 0
      %p56 = por %p54, %p55
      %s58 = sadd.s32 %s57, 1
      %p61 = scmp.eq.s32.totalorder %s16, 3
      %p62 = scmp.ne.s32.totalorder %s57, %s59
      %p63 = scmp.eq.s32.totalorder %s16, 0
      %p64 = por %p62, %p63
      %p65 = scmp.ne.s32.totalorder %s57, %s59
      %p66 = scmp.eq.s32.totalorder %s21, 3
      %p67 = por %p65, %p66
      %p68 = scmp.ne.s32.totalorder %s59, %s60
      %p69 = scmp.eq.s32.totalorder %s21, 0
      %p70 = por %p68, %p69
      %p71 = scmp.ne.s32.totalorder %s59, %s60
      %p72 = scmp.eq.s32.totalorder %s22, 3
      %p73 = por %p71, %p72
      %p75 = scmp.ne.s32.totalorder %s60, %s74
      %p76 = scmp.eq.s32.totalorder %s22, 0
      %p77 = por %p75, %p76
      %s79 = sadd.s32 %s78, 1
      %p82 = scmp.eq.s32.totalorder %s16, 3
      %p83 = scmp.ne.s32.totalorder %s78, %s80
      %p84 = scmp.eq.s32.totalorder %s16, 0
      %p85 = por %p83, %p84
      %p86 = scmp.ne.s32.totalorder %s78, %s80
      %p87 = scmp.eq.s32.totalorder %s21, 3
      %p88 = por %p86, %p87
      %p89 = scmp.ne.s32.totalorder %s80, %s81
      %p90 = scmp.eq.s32.totalorder %s21, 0
      %p91 = por %p89, %p90
      %p92 = scmp.ne.s32.totalorder %s80, %s81
      %p93 = scmp.eq.s32.totalorder %s22, 3
      %p94 = por %p92, %p93
      %p96 = scmp.ne.s32.totalorder %s81, %s95
      %p97 = scmp.eq.s32.totalorder %s22, 0
      %p98 = por %p96, %p97
      %s100 = sadd.s32 %s99, 1
      %p103 = scmp.eq.s32.totalorder %s16, 3
      %p104 = scmp.ne.s32.totalorder %s99, %s101
      %p105 = scmp.eq.s32.totalorder %s16, 0
      %p106 = por %p104, %p105
      %p107 = scmp.ne.s32.totalorder %s99, %s101
      %p108 = scmp.eq.s32.totalorder %s21, 3
      %p109 = por %p107, %p108
      %p110 = scmp.ne.s32.totalorder %s101, %s102
      %p111 = scmp.eq.s32.totalorder %s21, 0
      %p112 = por %p110, %p111
      %p113 = scmp.ne.s32.totalorder %s101, %s102
      %p114 = scmp.eq.s32.totalorder %s22, 3
      %p115 = por %p113, %p114
      %p117 = scmp.ne.s32.totalorder %s102, %s116
      %p118 = scmp.eq.s32.totalorder %s22, 0
      %p119 = por %p117, %p118
      %s121 = sadd.s32 %s120, 1
      %p124 = scmp.eq.s32.totalorder %s16, 3
      %p125 = scmp.ne.s32.totalorder %s120, %s122
      %p126 = scmp.eq.s32.totalorder %s16, 0
      %p127 = por %p125, %p126
      %p128 = scmp.ne.s32.totalorder %s120, %s122
      %p129 = scmp.eq.s32.totalorder %s21, 3
      %p130 = por %p128, %p129
      %p131 = scmp.ne.s32.totalorder %s122, %s123
      %p132 = scmp.eq.s32.totalorder %s21, 0
      %p133 = por %p131, %p132
      %p134 = scmp.ne.s32.totalorder %s122, %s123
      %p135 = scmp.eq.s32.totalorder %s22, 3
      %p136 = por %p134, %p135
      %p138 = scmp.ne.s32.totalorder %s123, %s137
      %p139 = scmp.eq.s32.totalorder %s22, 0
      %p140 = por %p138, %p139
      %s142 = sadd.s32 %s141, 1
      %p145 = scmp.eq.s32.totalorder %s16, 3
      %p146 = scmp.ne.s32.totalorder %s141, %s143
      %p147 = scmp.eq.s32.totalorder %s16, 0
      %p148 = por %p146, %p147
      %p149 = scmp.ne.s32.totalorder %s141, %s143
      %p150 = scmp.eq.s32.totalorder %s21, 3
      %p151 = por %p149, %p150
      %p152 = scmp.ne.s32.totalorder %s143, %s144
      %p153 = scmp.eq.s32.totalorder %s21, 0
      %p154 = por %p152, %p153
      %p155 = scmp.ne.s32.totalorder %s143, %s144
      %p156 = scmp.eq.s32.totalorder %s22, 3
      %p157 = por %p155, %p156
      %p159 = scmp.ne.s32.totalorder %s144, %s158
      %p160 = scmp.eq.s32.totalorder %s22, 0
      %p161 = por %p159, %p160
      %s162 = ssub.s32 %s23, %s35
      %s163 = ssub.s32 %s24, %s31
      %s164 = sor.u32 %s162, %s163
      %p165 = scmp.eq.s32.totalorder %s164, 0
      %s167 = sadd.s32 %s166, 1
      %s168 = scalar_select %p165, %s166, %s167
      %p171 = pneg %p165
      %p172 = scmp.eq.s32.totalorder %s16, 3
      %p173 = por %p171, %p172
      %p174 = scmp.ne.s32.totalorder %s166, %s169
      %p175 = scmp.eq.s32.totalorder %s16, 0
      %p176 = por %p174, %p175
      %p177 = scmp.ne.s32.totalorder %s166, %s169
      %p178 = scmp.eq.s32.totalorder %s21, 3
      %p179 = por %p177, %p178
      %p180 = scmp.ne.s32.totalorder %s169, %s170
      %p181 = scmp.eq.s32.totalorder %s21, 0
      %p182 = por %p180, %p181
      %p183 = scmp.ne.s32.totalorder %s169, %s170
      %p184 = scmp.eq.s32.totalorder %s22, 3
      %p185 = por %p183, %p184
      %p187 = scmp.ne.s32.totalorder %s170, %s186
      %p188 = scmp.eq.s32.totalorder %s22, 0
      %p189 = por %p187, %p188
      %p190 = scmp.le.s32.totalorder 1, %s16
      %p191 = scmp.lt.s32.totalorder %s16, 5
      %p192 = pnand %p190, %p191
      %p193 = pneg %p192
      // Predicated region
      $region9: #{tpu_custom_call.1} parent=5 // pred_check
        _
      $region10: #{tpu_custom_call.1} parent=5 // pred_check_branch
        %195 = sbr.rel (%p192) target = $region12
      $region11: #{tpu_custom_call.1} parent=5 // pred_region
        %s196 = ssub.s32 %s16, 1
        // Predicated region
        $region13: #{tpu_custom_call.1} parent=11 // pred_check
          %p197 = pneg %p49
        $region14: #{tpu_custom_call.1} parent=11 // pred_check_branch
          %199 = sbr.rel (%p197) target = $region16
        $region15: #{tpu_custom_call.1} parent=11 // pred_region
          _
        $region16: #{tpu_custom_call.1} parent=11 // pred_fallthru
          _
        // Predicated region
        $region17: #{tpu_custom_call.1} parent=11 // pred_check
          %p200 = pneg %p70
        $region18: #{tpu_custom_call.1} parent=11 // pred_check_branch
          %202 = sbr.rel (%p200) target = $region20
        $region19: #{tpu_custom_call.1} parent=11 // pred_region
          _
        $region20: #{tpu_custom_call.1} parent=11 // pred_fallthru
          _
        // Predicated region
        $region21: #{tpu_custom_call.1} parent=11 // pred_check
          %p203 = pneg %p91
        $region22: #{tpu_custom_call.1} parent=11 // pred_check_branch
          %205 = sbr.rel (%p203) target = $region24
        $region23: #{tpu_custom_call.1} parent=11 // pred_region
          _
        $region24: #{tpu_custom_call.1} parent=11 // pred_fallthru
          _
        // Predicated region
        $region25: #{tpu_custom_call.1} parent=11 // pred_check
          %p206 = pneg %p112
        $region26: #{tpu_custom_call.1} parent=11 // pred_check_branch
          %208 = sbr.rel (%p206) target = $region28
        $region27: #{tpu_custom_call.1} parent=11 // pred_region
          _
        $region28: #{tpu_custom_call.1} parent=11 // pred_fallthru
          _
        // Predicated region
        $region29: #{tpu_custom_call.1} parent=11 // pred_check
          %p209 = pneg %p133
        $region30: #{tpu_custom_call.1} parent=11 // pred_check_branch
          %211 = sbr.rel (%p209) target = $region32
        $region31: #{tpu_custom_call.1} parent=11 // pred_region
          _
        $region32: #{tpu_custom_call.1} parent=11 // pred_fallthru
          _
        // Predicated region
        $region33: #{tpu_custom_call.1} parent=11 // pred_check
          %p212 = pneg %p154
        $region34: #{tpu_custom_call.1} parent=11 // pred_check_branch
          %214 = sbr.rel (%p212) target = $region36
        $region35: #{tpu_custom_call.1} parent=11 // pred_region
          _
        $region36: #{tpu_custom_call.1} parent=11 // pred_fallthru
          _
      $region12: #{tpu_custom_call.1} parent=5 // pred_fallthru
        _
      %p215 = scmp.lt.s32.totalorder %s16, 4
      // Predicated region
      $region37: #{tpu_custom_call.1} parent=5 // pred_check
        %p216 = pneg %p215
      $region38: #{tpu_custom_call.1} parent=5 // pred_check_branch
        %218 = sbr.rel (%p216) target = $region40
      $region39: #{tpu_custom_call.1} parent=5 // pred_region
        _
      $region40: #{tpu_custom_call.1} parent=5 // pred_fallthru
        _
      %p219 = scmp.le.s32.totalorder 1, %s16
      %p220 = scmp.lt.s32.totalorder %s16, 5
      %p221 = pnand %p219, %p220
      %p222 = pneg %p221
      // Predicated region
      $region41: #{tpu_custom_call.1} parent=5 // pred_check
        _
      $region42: #{tpu_custom_call.1} parent=5 // pred_check_branch
        %224 = sbr.rel (%p221) target = $region44
      $region43: #{tpu_custom_call.1} parent=5 // pred_region
        %s225 = ssub.s32 %s16, 1
        %p226 = pneg %p49
        %p227 = pneg %p46
        %p228 = pneg %p70
        %p229 = pneg %p67
        %p230 = pneg %p91
        %p231 = pneg %p88
        %p232 = pneg %p112
        %p233 = pneg %p109
        %p234 = pneg %p133
        %p235 = pneg %p130
        %p236 = pneg %p154
        %p237 = pneg %p151
        %p238 = pneg %p182
        %p239 = pneg %p179
        %s240 = sand.u32 %s169, 1
        %s241 = scalar_lea.sflag [#allocation5], %s240
        %s242 = sand.u32 %s169, 1
        %s243 = smul.addr %s242, 128
        %s244 = scalar_lea.vmem [#allocation4], %s243
        %s245 = smul.u32 8, %s26
        %p246 = scmp.lt.s32.totalorder %s26, 0
        %s247 = ssub.s32 0, %s26
        %s248 = scalar_select %p246, %s247, %s26
        %s249 = sand.u32 %s248, 1
        %s250 = ssub.s32 0, %s249
        %s251 = scalar_select %p246, %s250, %s249
        %p252 = scmp.eq.s32.totalorder %s26, 0
        // Predicated region
        $region45: #{tpu_custom_call.1} parent=43 // pred_check
          %p253 = pneg %p252
        $region46: #{tpu_custom_call.1} parent=43 // pred_check_branch
          %255 = sbr.rel (%p253) target = $region48
        $region47: #{tpu_custom_call.1} parent=43 // pred_region
          %s256 = smul.u32 %s25, 480
          %s257 = scalar_lea.vmem %s0, %s256
          %p259 = scmp.lt.u32.totalorder 20, 8
          %p260 = pneg %p259
          // Predicated region
          $region49: #{tpu_custom_call.1} parent=47 // pred_check
            _
          $region50: #{tpu_custom_call.1} parent=47 // pred_check_branch
            %262 = sbr.rel (%p259) target = $region52
          $region51: #{tpu_custom_call.1} parent=47 // pred_region
            %s300 = sand.u32 20, 7
            %p301 = scmp.eq.s32.totalorder %s300, 0
            %p302 = pneg %p301
            // Predicated region
            $region64: #{tpu_custom_call.1} parent=51 // pred_check
              _
            $region65: #{tpu_custom_call.1} parent=51 // pred_check_branch
              %304 = sbr.rel (%p301) target = $region67
            $region66: #{tpu_custom_call.1} parent=51 // pred_region
              %s305 = sand.u32 20, 7
              %s306 = ssub.s32 20, %s305
              %s307 = scalar_lea.vmem %s257, %s306
              %s308 = ssub.s32 20, %s305
              %s309 = scalar_lea.vmem [#allocation2], %s308
              loop: start=0, step=1, limit=1
              $region68: #{tpu_custom_call.1} parent=66 // loop_pre_header
                _
              $region69: #{tpu_custom_call.1} parent=66 // loop_header
                %s311 = sphi 0, %s315
                %p312 = scmp.ge.s32.totalorder %s311, 1
                %s316 = sphi %s257, %s257
                %s317 = sphi [#allocation2], [#allocation2]
              $region70: #{tpu_custom_call.1} parent=66 // loop_header_branch
                %314 = sbr.rel (%p312) target = $region74
              $region71: #{tpu_custom_call.1} parent=66 // loop_body
                %v318 = vld [vmem:[%s316] sm:$0xff]
                %319 = vst [vmem:[%s317] sm:$0xff] %v318
                %v320 = vld [vmem:[%s316 + $0x8] sm:$0xff]
                %321 = vst [vmem:[%s317 + $0x8] sm:$0xff] %v320
                %v322 = vld [vmem:[%s316 + $0x18] sm:$0xff]
                %323 = vst [vmem:[%s317 + $0x18] sm:$0xff] %v322
                %v324 = vld [vmem:[%s316 + $0x20] sm:$0xff]
                %325 = vst [vmem:[%s317 + $0x20] sm:$0xff] %v324
                %v326 = vld [vmem:[%s316 + $0x30] sm:$0xff]
                %327 = vst [vmem:[%s317 + $0x30] sm:$0xff] %v326
                %v328 = vld [vmem:[%s316 + $0x38] sm:$0xff]
                %329 = vst [vmem:[%s317 + $0x38] sm:$0xff] %v328
                %v330 = vld [vmem:[%s316 + $0x48] sm:$0xff]
                %331 = vst [vmem:[%s317 + $0x48] sm:$0xff] %v330
                %v332 = vld [vmem:[%s316 + $0x50] sm:$0xff]
                %333 = vst [vmem:[%s317 + $0x50] sm:$0xff] %v332
                %v334 = vld [vmem:[%s316 + $0x60] sm:$0xff]
                %335 = vst [vmem:[%s317 + $0x60] sm:$0xff] %v334
                %v336 = vld [vmem:[%s316 + $0x68] sm:$0xff]
                %337 = vst [vmem:[%s317 + $0x68] sm:$0xff] %v336
                %v338 = vld [vmem:[%s316 + $0x78] sm:$0xff]
                %339 = vst [vmem:[%s317 + $0x78] sm:$0xff] %v338
                %v340 = vld [vmem:[%s316 + $0x80] sm:$0xff]
                %341 = vst [vmem:[%s317 + $0x80] sm:$0xff] %v340
                %v342 = vld [vmem:[%s316 + $0x90] sm:$0xff]
                %343 = vst [vmem:[%s317 + $0x90] sm:$0xff] %v342
                %v344 = vld [vmem:[%s316 + $0x98] sm:$0xff]
                %345 = vst [vmem:[%s317 + $0x98] sm:$0xff] %v344
                %v346 = vld [vmem:[%s316 + $0xa8] sm:$0xff]
                %347 = vst [vmem:[%s317 + $0xa8] sm:$0xff] %v346
                %v348 = vld [vmem:[%s316 + $0xb0] sm:$0xff]
                %349 = vst [vmem:[%s317 + $0xb0] sm:$0xff] %v348
                %v350 = vld [vmem:[%s316 + $0xc0] sm:$0xff]
                %351 = vst [vmem:[%s317 + $0xc0] sm:$0xff] %v350
                %v352 = vld [vmem:[%s316 + $0xc8] sm:$0xff]
                %353 = vst [vmem:[%s317 + $0xc8] sm:$0xff] %v352
                %v354 = vld [vmem:[%s316 + $0xd8] sm:$0xff]
                %355 = vst [vmem:[%s317 + $0xd8] sm:$0xff] %v354
                %v356 = vld [vmem:[%s316 + $0xe0] sm:$0xff]
                %357 = vst [vmem:[%s317 + $0xe0] sm:$0xff] %v356
                %v358 = vld [vmem:[%s316 + $0xf0] sm:$0xff]
                %359 = vst [vmem:[%s317 + $0xf0] sm:$0xff] %v358
                %v360 = vld [vmem:[%s316 + $0xf8] sm:$0xff]
                %361 = vst [vmem:[%s317 + $0xf8] sm:$0xff] %v360
                %v362 = vld [vmem:[%s316 + $0x108] sm:$0xff]
                %363 = vst [vmem:[%s317 + $0x108] sm:$0xff] %v362
                %v364 = vld [vmem:[%s316 + $0x110] sm:$0xff]
                %365 = vst [vmem:[%s317 + $0x110] sm:$0xff] %v364
              $region72: #{tpu_custom_call.1} parent=66 // loop_footer
                %s315 = sadd.s32 1, %s311
              $region73: #{tpu_custom_call.1} parent=66 // loop_footer_branch
                %310 = sbr.rel target = $region69
              $region74: #{tpu_custom_call.1} parent=66 // loop_exit
                _
              %s366 = sshll.u32 1, %s305
              %s367 = ssub.s32 %s366, 1
              loop: start=0, step=1, limit=1
              $region75: #{tpu_custom_call.1} parent=66 // loop_pre_header
                _
              $region76: #{tpu_custom_call.1} parent=66 // loop_header
                %s369 = sphi 0, %s373
                %p370 = scmp.ge.s32.totalorder %s369, 1
                %s374 = sphi %s307, %s307
                %s375 = sphi %s309, %s309
              $region77: #{tpu_custom_call.1} parent=66 // loop_header_branch
                %372 = sbr.rel (%p370) target = $region81
              $region78: #{tpu_custom_call.1} parent=66 // loop_body
                %v376 = vld [vmem:[%s374] sm:%s367]
                %377 = vst [vmem:[%s375] sm:%s367] %v376
                %v378 = vld [vmem:[%s374 + $0x18] sm:%s367]
                %379 = vst [vmem:[%s375 + $0x18] sm:%s367] %v378
                %v380 = vld [vmem:[%s374 + $0x30] sm:%s367]
                %381 = vst [vmem:[%s375 + $0x30] sm:%s367] %v380
                %v382 = vld [vmem:[%s374 + $0x48] sm:%s367]
                %383 = vst [vmem:[%s375 + $0x48] sm:%s367] %v382
                %v384 = vld [vmem:[%s374 + $0x60] sm:%s367]
                %385 = vst [vmem:[%s375 + $0x60] sm:%s367] %v384
                %v386 = vld [vmem:[%s374 + $0x78] sm:%s367]
                %387 = vst [vmem:[%s375 + $0x78] sm:%s367] %v386
                %v388 = vld [vmem:[%s374 + $0x90] sm:%s367]
                %389 = vst [vmem:[%s375 + $0x90] sm:%s367] %v388
                %v390 = vld [vmem:[%s374 + $0xa8] sm:%s367]
                %391 = vst [vmem:[%s375 + $0xa8] sm:%s367] %v390
                %v392 = vld [vmem:[%s374 + $0xc0] sm:%s367]
                %393 = vst [vmem:[%s375 + $0xc0] sm:%s367] %v392
                %v394 = vld [vmem:[%s374 + $0xd8] sm:%s367]
                %395 = vst [vmem:[%s375 + $0xd8] sm:%s367] %v394
                %v396 = vld [vmem:[%s374 + $0xf0] sm:%s367]
                %397 = vst [vmem:[%s375 + $0xf0] sm:%s367] %v396
                %v398 = vld [vmem:[%s374 + $0x108] sm:%s367]
                %399 = vst [vmem:[%s375 + $0x108] sm:%s367] %v398
              $region79: #{tpu_custom_call.1} parent=66 // loop_footer
                %s373 = sadd.s32 1, %s369
              $region80: #{tpu_custom_call.1} parent=66 // loop_footer_branch
                %368 = sbr.rel target = $region76
              $region81: #{tpu_custom_call.1} parent=66 // loop_exit
                _
            $region67: #{tpu_custom_call.1} parent=51 // pred_fallthru
              _
          $region52: #{tpu_custom_call.1} parent=47 // pred_fallthru
            _
          // Predicated region
          $region53: #{tpu_custom_call.1} parent=47 // pred_check
            %p263 = pneg %p259
          $region54: #{tpu_custom_call.1} parent=47 // pred_check_branch
            %265 = sbr.rel (%p263) target = $region56
          $region55: #{tpu_custom_call.1} parent=47 // pred_region
            %s266 = sshll.u32 1, 20
            %s267 = ssub.s32 %s266, 1
            loop: start=0, step=1, limit=1
            $region57: #{tpu_custom_call.1} parent=55 // loop_pre_header
              _
            $region58: #{tpu_custom_call.1} parent=55 // loop_header
              %s269 = sphi 0, %s273
              %p270 = scmp.ge.s32.totalorder %s269, 1
              %s274 = sphi %s257, %s257
              %s275 = sphi [#allocation2], [#allocation2]
            $region59: #{tpu_custom_call.1} parent=55 // loop_header_branch
              %272 = sbr.rel (%p270) target = $region63
            $region60: #{tpu_custom_call.1} parent=55 // loop_body
              %v276 = vld [vmem:[%s274] sm:%s267]
              %277 = vst [vmem:[%s275] sm:%s267] %v276
              %v278 = vld [vmem:[%s274 + $0x18] sm:%s267]
              %279 = vst [vmem:[%s275 + $0x18] sm:%s267] %v278
              %v280 = vld [vmem:[%s274 + $0x30] sm:%s267]
              %281 = vst [vmem:[%s275 + $0x30] sm:%s267] %v280
              %v282 = vld [vmem:[%s274 + $0x48] sm:%s267]
              %283 = vst [vmem:[%s275 + $0x48] sm:%s267] %v282
              %v284 = vld [vmem:[%s274 + $0x60] sm:%s267]
              %285 = vst [vmem:[%s275 + $0x60] sm:%s267] %v284
              %v286 = vld [vmem:[%s274 + $0x78] sm:%s267]
              %287 = vst [vmem:[%s275 + $0x78] sm:%s267] %v286
              %v288 = vld [vmem:[%s274 + $0x90] sm:%s267]
              %289 = vst [vmem:[%s275 + $0x90] sm:%s267] %v288
              %v290 = vld [vmem:[%s274 + $0xa8] sm:%s267]
              %291 = vst [vmem:[%s275 + $0xa8] sm:%s267] %v290
              %v292 = vld [vmem:[%s274 + $0xc0] sm:%s267]
              %293 = vst [vmem:[%s275 + $0xc0] sm:%s267] %v292
              %v294 = vld [vmem:[%s274 + $0xd8] sm:%s267]
              %295 = vst [vmem:[%s275 + $0xd8] sm:%s267] %v294
              %v296 = vld [vmem:[%s274 + $0xf0] sm:%s267]
              %297 = vst [vmem:[%s275 + $0xf0] sm:%s267] %v296
              %v298 = vld [vmem:[%s274 + $0x108] sm:%s267]
              %299 = vst [vmem:[%s275 + $0x108] sm:%s267] %v298
            $region61: #{tpu_custom_call.1} parent=55 // loop_footer
              %s273 = sadd.s32 1, %s269
            $region62: #{tpu_custom_call.1} parent=55 // loop_footer_branch
              %268 = sbr.rel target = $region58
            $region63: #{tpu_custom_call.1} parent=55 // loop_exit
              _
          $region56: #{tpu_custom_call.1} parent=47 // pred_fallthru
            _
          // Predicated region
          $region82: #{tpu_custom_call.1} parent=47 // pred_check
            _
          $region83: #{tpu_custom_call.1} parent=47 // pred_check_branch
            %402 = sbr.rel (0) target = $region85
          $region84: #{tpu_custom_call.1} parent=47 // pred_region
            %403 = vsyncadd [#allocation3], 3840
          $region85: #{tpu_custom_call.1} parent=47 // pred_fallthru
            _
        $region48: #{tpu_custom_call.1} parent=43 // pred_fallthru
          _
        %s404 = smul.u32 %s251, 288
        %s405 = scalar_lea.vmem [#allocation2], %s404
        %s406 = scalar_lea.sflag [#allocation3], %s251
        %s407 = smul.u32 12, 20
        %s408 = smul.u32 %s407, 1
        %s409 = sshll.u32 %s408, 4
        %410 = dma.done %s406, %s409
        %s411 = sadd.s32 %s26, 1
        %p412 = scmp.lt.s32.totalorder %s411, 2
        // Predicated region
        $region86: #{tpu_custom_call.1} parent=43 // pred_check
          %p413 = pneg %p412
        $region87: #{tpu_custom_call.1} parent=43 // pred_check_branch
          %415 = sbr.rel (%p413) target = $region89
        $region88: #{tpu_custom_call.1} parent=43 // pred_region
          %s416 = ssub.s32 1, %s251
          %s417 = smul.u32 %s411, 8
          %s418 = smul.u32 %s417, 24
          %s419 = smul.u32 %s25, 480
          %s420 = sadd.s32 %s418, %s419
          %s421 = scalar_lea.vmem %s0, %s420
          %s422 = smul.u32 %s416, 288
          %s423 = scalar_lea.vmem [#allocation2], %s422
          %s424 = scalar_lea.sflag [#allocation3], %s416
          %p426 = scmp.lt.u32.totalorder 20, 8
          %p427 = pneg %p426
          // Predicated region
          $region90: #{tpu_custom_call.1} parent=88 // pred_check
            _
          $region91: #{tpu_custom_call.1} parent=88 // pred_check_branch
            %429 = sbr.rel (%p426) target = $region93
          $region92: #{tpu_custom_call.1} parent=88 // pred_region
            %s467 = sand.u32 20, 7
            %p468 = scmp.eq.s32.totalorder %s467, 0
            %p469 = pneg %p468
            // Predicated region
            $region105: #{tpu_custom_call.1} parent=92 // pred_check
              _
            $region106: #{tpu_custom_call.1} parent=92 // pred_check_branch
              %471 = sbr.rel (%p468) target = $region108
            $region107: #{tpu_custom_call.1} parent=92 // pred_region
              %s472 = sand.u32 20, 7
              %s473 = ssub.s32 20, %s472
              %s474 = scalar_lea.vmem %s421, %s473
              %s475 = ssub.s32 20, %s472
              %s476 = scalar_lea.vmem %s423, %s475 [#allocation2]
              loop: start=0, step=1, limit=1
              $region109: #{tpu_custom_call.1} parent=107 // loop_pre_header
                _
              $region110: #{tpu_custom_call.1} parent=107 // loop_header
                %s478 = sphi 0, %s482
                %p479 = scmp.ge.s32.totalorder %s478, 1
                %s483 = sphi %s421, %s421
                %s484 = sphi %s423, %s423
              $region111: #{tpu_custom_call.1} parent=107 // loop_header_branch
                %481 = sbr.rel (%p479) target = $region115
              $region112: #{tpu_custom_call.1} parent=107 // loop_body
                %v485 = vld [vmem:[%s483] sm:$0xff]
                %486 = vst [vmem:[%s484] sm:$0xff] %v485
                %v487 = vld [vmem:[%s483 + $0x8] sm:$0xff]
                %488 = vst [vmem:[%s484 + $0x8] sm:$0xff] %v487
                %v489 = vld [vmem:[%s483 + $0x18] sm:$0xff]
                %490 = vst [vmem:[%s484 + $0x18] sm:$0xff] %v489
                %v491 = vld [vmem:[%s483 + $0x20] sm:$0xff]
                %492 = vst [vmem:[%s484 + $0x20] sm:$0xff] %v491
                %v493 = vld [vmem:[%s483 + $0x30] sm:$0xff]
                %494 = vst [vmem:[%s484 + $0x30] sm:$0xff] %v493
                %v495 = vld [vmem:[%s483 + $0x38] sm:$0xff]
                %496 = vst [vmem:[%s484 + $0x38] sm:$0xff] %v495
                %v497 = vld [vmem:[%s483 + $0x48] sm:$0xff]
                %498 = vst [vmem:[%s484 + $0x48] sm:$0xff] %v497
                %v499 = vld [vmem:[%s483 + $0x50] sm:$0xff]
                %500 = vst [vmem:[%s484 + $0x50] sm:$0xff] %v499
                %v501 = vld [vmem:[%s483 + $0x60] sm:$0xff]
                %502 = vst [vmem:[%s484 + $0x60] sm:$0xff] %v501
                %v503 = vld [vmem:[%s483 + $0x68] sm:$0xff]
                %504 = vst [vmem:[%s484 + $0x68] sm:$0xff] %v503
                %v505 = vld [vmem:[%s483 + $0x78] sm:$0xff]
                %506 = vst [vmem:[%s484 + $0x78] sm:$0xff] %v505
                %v507 = vld [vmem:[%s483 + $0x80] sm:$0xff]
                %508 = vst [vmem:[%s484 + $0x80] sm:$0xff] %v507
                %v509 = vld [vmem:[%s483 + $0x90] sm:$0xff]
                %510 = vst [vmem:[%s484 + $0x90] sm:$0xff] %v509
                %v511 = vld [vmem:[%s483 + $0x98] sm:$0xff]
                %512 = vst [vmem:[%s484 + $0x98] sm:$0xff] %v511
                %v513 = vld [vmem:[%s483 + $0xa8] sm:$0xff]
                %514 = vst [vmem:[%s484 + $0xa8] sm:$0xff] %v513
                %v515 = vld [vmem:[%s483 + $0xb0] sm:$0xff]
                %516 = vst [vmem:[%s484 + $0xb0] sm:$0xff] %v515
                %v517 = vld [vmem:[%s483 + $0xc0] sm:$0xff]
                %518 = vst [vmem:[%s484 + $0xc0] sm:$0xff] %v517
                %v519 = vld [vmem:[%s483 + $0xc8] sm:$0xff]
                %520 = vst [vmem:[%s484 + $0xc8] sm:$0xff] %v519
                %v521 = vld [vmem:[%s483 + $0xd8] sm:$0xff]
                %522 = vst [vmem:[%s484 + $0xd8] sm:$0xff] %v521
                %v523 = vld [vmem:[%s483 + $0xe0] sm:$0xff]
                %524 = vst [vmem:[%s484 + $0xe0] sm:$0xff] %v523
                %v525 = vld [vmem:[%s483 + $0xf0] sm:$0xff]
                %526 = vst [vmem:[%s484 + $0xf0] sm:$0xff] %v525
                %v527 = vld [vmem:[%s483 + $0xf8] sm:$0xff]
                %528 = vst [vmem:[%s484 + $0xf8] sm:$0xff] %v527
                %v529 = vld [vmem:[%s483 + $0x108] sm:$0xff]
                %530 = vst [vmem:[%s484 + $0x108] sm:$0xff] %v529
                %v531 = vld [vmem:[%s483 + $0x110] sm:$0xff]
                %532 = vst [vmem:[%s484 + $0x110] sm:$0xff] %v531
              $region113: #{tpu_custom_call.1} parent=107 // loop_footer
                %s482 = sadd.s32 1, %s478
              $region114: #{tpu_custom_call.1} parent=107 // loop_footer_branch
                %477 = sbr.rel target = $region110
              $region115: #{tpu_custom_call.1} parent=107 // loop_exit
                _
              %s533 = sshll.u32 1, %s472
              %s534 = ssub.s32 %s533, 1
              loop: start=0, step=1, limit=1
              $region116: #{tpu_custom_call.1} parent=107 // loop_pre_header
                _
              $region117: #{tpu_custom_call.1} parent=107 // loop_header
                %s536 = sphi 0, %s540
                %p537 = scmp.ge.s32.totalorder %s536, 1
                %s541 = sphi %s474, %s474
                %s542 = sphi %s476, %s476
              $region118: #{tpu_custom_call.1} parent=107 // loop_header_branch
                %539 = sbr.rel (%p537) target = $region122
              $region119: #{tpu_custom_call.1} parent=107 // loop_body
                %v543 = vld [vmem:[%s541] sm:%s534]
                %544 = vst [vmem:[%s542] sm:%s534] %v543
                %v545 = vld [vmem:[%s541 + $0x18] sm:%s534]
                %546 = vst [vmem:[%s542 + $0x18] sm:%s534] %v545
                %v547 = vld [vmem:[%s541 + $0x30] sm:%s534]
                %548 = vst [vmem:[%s542 + $0x30] sm:%s534] %v547
                %v549 = vld [vmem:[%s541 + $0x48] sm:%s534]
                %550 = vst [vmem:[%s542 + $0x48] sm:%s534] %v549
                %v551 = vld [vmem:[%s541 + $0x60] sm:%s534]
                %552 = vst [vmem:[%s542 + $0x60] sm:%s534] %v551
                %v553 = vld [vmem:[%s541 + $0x78] sm:%s534]
                %554 = vst [vmem:[%s542 + $0x78] sm:%s534] %v553
                %v555 = vld [vmem:[%s541 + $0x90] sm:%s534]
                %556 = vst [vmem:[%s542 + $0x90] sm:%s534] %v555
                %v557 = vld [vmem:[%s541 + $0xa8] sm:%s534]
                %558 = vst [vmem:[%s542 + $0xa8] sm:%s534] %v557
                %v559 = vld [vmem:[%s541 + $0xc0] sm:%s534]
                %560 = vst [vmem:[%s542 + $0xc0] sm:%s534] %v559
                %v561 = vld [vmem:[%s541 + $0xd8] sm:%s534]
                %562 = vst [vmem:[%s542 + $0xd8] sm:%s534] %v561
                %v563 = vld [vmem:[%s541 + $0xf0] sm:%s534]
                %564 = vst [vmem:[%s542 + $0xf0] sm:%s534] %v563
                %v565 = vld [vmem:[%s541 + $0x108] sm:%s534]
                %566 = vst [vmem:[%s542 + $0x108] sm:%s534] %v565
              $region120: #{tpu_custom_call.1} parent=107 // loop_footer
                %s540 = sadd.s32 1, %s536
              $region121: #{tpu_custom_call.1} parent=107 // loop_footer_branch
                %535 = sbr.rel target = $region117
              $region122: #{tpu_custom_call.1} parent=107 // loop_exit
                _
            $region108: #{tpu_custom_call.1} parent=92 // pred_fallthru
              _
          $region93: #{tpu_custom_call.1} parent=88 // pred_fallthru
            _
          // Predicated region
          $region94: #{tpu_custom_call.1} parent=88 // pred_check
            %p430 = pneg %p426
          $region95: #{tpu_custom_call.1} parent=88 // pred_check_branch
            %432 = sbr.rel (%p430) target = $region97
          $region96: #{tpu_custom_call.1} parent=88 // pred_region
            %s433 = sshll.u32 1, 20
            %s434 = ssub.s32 %s433, 1
            loop: start=0, step=1, limit=1
            $region98: #{tpu_custom_call.1} parent=96 // loop_pre_header
              _
            $region99: #{tpu_custom_call.1} parent=96 // loop_header
              %s436 = sphi 0, %s440
              %p437 = scmp.ge.s32.totalorder %s436, 1
              %s441 = sphi %s421, %s421
              %s442 = sphi %s423, %s423
            $region100: #{tpu_custom_call.1} parent=96 // loop_header_branch
              %439 = sbr.rel (%p437) target = $region104
            $region101: #{tpu_custom_call.1} parent=96 // loop_body
              %v443 = vld [vmem:[%s441] sm:%s434]
              %444 = vst [vmem:[%s442] sm:%s434] %v443
              %v445 = vld [vmem:[%s441 + $0x18] sm:%s434]
              %446 = vst [vmem:[%s442 + $0x18] sm:%s434] %v445
              %v447 = vld [vmem:[%s441 + $0x30] sm:%s434]
              %448 = vst [vmem:[%s442 + $0x30] sm:%s434] %v447
              %v449 = vld [vmem:[%s441 + $0x48] sm:%s434]
              %450 = vst [vmem:[%s442 + $0x48] sm:%s434] %v449
              %v451 = vld [vmem:[%s441 + $0x60] sm:%s434]
              %452 = vst [vmem:[%s442 + $0x60] sm:%s434] %v451
              %v453 = vld [vmem:[%s441 + $0x78] sm:%s434]
              %454 = vst [vmem:[%s442 + $0x78] sm:%s434] %v453
              %v455 = vld [vmem:[%s441 + $0x90] sm:%s434]
              %456 = vst [vmem:[%s442 + $0x90] sm:%s434] %v455
              %v457 = vld [vmem:[%s441 + $0xa8] sm:%s434]
              %458 = vst [vmem:[%s442 + $0xa8] sm:%s434] %v457
              %v459 = vld [vmem:[%s441 + $0xc0] sm:%s434]
              %460 = vst [vmem:[%s442 + $0xc0] sm:%s434] %v459
              %v461 = vld [vmem:[%s441 + $0xd8] sm:%s434]
              %462 = vst [vmem:[%s442 + $0xd8] sm:%s434] %v461
              %v463 = vld [vmem:[%s441 + $0xf0] sm:%s434]
              %464 = vst [vmem:[%s442 + $0xf0] sm:%s434] %v463
              %v465 = vld [vmem:[%s441 + $0x108] sm:%s434]
              %466 = vst [vmem:[%s442 + $0x108] sm:%s434] %v465
            $region102: #{tpu_custom_call.1} parent=96 // loop_footer
              %s440 = sadd.s32 1, %s436
            $region103: #{tpu_custom_call.1} parent=96 // loop_footer_branch
              %435 = sbr.rel target = $region99
            $region104: #{tpu_custom_call.1} parent=96 // loop_exit
              _
          $region97: #{tpu_custom_call.1} parent=88 // pred_fallthru
            _
          // Predicated region
          $region123: #{tpu_custom_call.1} parent=88 // pred_check
            _
          $region124: #{tpu_custom_call.1} parent=88 // pred_check_branch
            %569 = sbr.rel (0) target = $region126
          $region125: #{tpu_custom_call.1} parent=88 // pred_region
            %570 = vsyncadd %s424, 3840
          $region126: #{tpu_custom_call.1} parent=88 // pred_fallthru
            _
        $region89: #{tpu_custom_call.1} parent=43 // pred_fallthru
          _
        %v571 = vld [vmem:[%s405] sm:$0xff]
        %v572 = vld [vmem:[%s405 + $0x8] sm:$0xff]
        %v573 = vld [vmem:[%s405 + $0x10] sm:$0xf]
        %v574 = vld [vmem:[%s405 + $0x18] sm:$0xff]
        %v575 = vld [vmem:[%s405 + $0x20] sm:$0xff]
        %v576 = vld [vmem:[%s405 + $0x28] sm:$0xf]
        %v577 = vld [vmem:[%s405 + $0x30] sm:$0xff]
        %v578 = vld [vmem:[%s405 + $0x38] sm:$0xff]
        %v579 = vld [vmem:[%s405 + $0x40] sm:$0xf]
        %v580 = vld [vmem:[%s405 + $0x48] sm:$0xff]
        %v581 = vld [vmem:[%s405 + $0x50] sm:$0xff]
        %v582 = vld [vmem:[%s405 + $0x58] sm:$0xf]
        %v583 = vld [vmem:[%s405 + $0x60] sm:$0xff]
        %v584 = vld [vmem:[%s405 + $0x68] sm:$0xff]
        %v585 = vld [vmem:[%s405 + $0x70] sm:$0xf]
        %v586 = vld [vmem:[%s405 + $0x78] sm:$0xff]
        %v587 = vld [vmem:[%s405 + $0x80] sm:$0xff]
        %v588 = vld [vmem:[%s405 + $0x88] sm:$0xf]
        %v589 = vld [vmem:[%s405 + $0x90] sm:$0xff]
        %v590 = vld [vmem:[%s405 + $0x98] sm:$0xff]
        %v591 = vld [vmem:[%s405 + $0xa0] sm:$0xf]
        %v592 = vld [vmem:[%s405 + $0xa8] sm:$0xff]
        %v593 = vld [vmem:[%s405 + $0xb0] sm:$0xff]
        %v594 = vld [vmem:[%s405 + $0xb8] sm:$0xf]
        %v595 = vld [vmem:[%s405 + $0xc0] sm:$0xff]
        %v596 = vld [vmem:[%s405 + $0xc8] sm:$0xff]
        %v597 = vld [vmem:[%s405 + $0xd0] sm:$0xf]
        %v598 = vld [vmem:[%s405 + $0xd8] sm:$0xff]
        %v599 = vld [vmem:[%s405 + $0xe0] sm:$0xff]
        %v600 = vld [vmem:[%s405 + $0xe8] sm:$0xf]
        %v601 = vld [vmem:[%s405 + $0xf0] sm:$0xff]
        %v602 = vld [vmem:[%s405 + $0xf8] sm:$0xff]
        %v603 = vld [vmem:[%s405 + $0x100] sm:$0xf]
        %v604 = vld [vmem:[%s405 + $0x108] sm:$0xff]
        %v605 = vld [vmem:[%s405 + $0x110] sm:$0xff]
        %v606 = vld [vmem:[%s405 + $0x118] sm:$0xf]
        %vm631 = vcmask 1045504
        %v632 = vrot.slane %v571, 2
        %v633 = vrot.slane %v572, 2
        %v634 = vsel %vm631, %v632, %v633
        %v635 = vrot.slane %v573, 2
        %v636 = vsel %vm631, %v633, %v635
        %v637 = vrot.slane %v574, 2
        %v638 = vrot.slane %v575, 2
        %v639 = vsel %vm631, %v637, %v638
        %v640 = vrot.slane %v576, 2
        %v641 = vsel %vm631, %v638, %v640
        %v642 = vrot.slane %v577, 2
        %v643 = vrot.slane %v578, 2
        %v644 = vsel %vm631, %v642, %v643
        %v645 = vrot.slane %v579, 2
        %v646 = vsel %vm631, %v643, %v645
        %v647 = vrot.slane %v580, 2
        %v648 = vrot.slane %v581, 2
        %v649 = vsel %vm631, %v647, %v648
        %v650 = vrot.slane %v582, 2
        %v651 = vsel %vm631, %v648, %v650
        %v652 = vrot.slane %v583, 2
        %v653 = vrot.slane %v584, 2
        %v654 = vsel %vm631, %v652, %v653
        %v655 = vrot.slane %v585, 2
        %v656 = vsel %vm631, %v653, %v655
        %v657 = vrot.slane %v586, 2
        %v658 = vrot.slane %v587, 2
        %v659 = vsel %vm631, %v657, %v658
        %v660 = vrot.slane %v588, 2
        %v661 = vsel %vm631, %v658, %v660
        %v662 = vrot.slane %v589, 2
        %v663 = vrot.slane %v590, 2
        %v664 = vsel %vm631, %v662, %v663
        %v665 = vrot.slane %v591, 2
        %v666 = vsel %vm631, %v663, %v665
        %v667 = vrot.slane %v592, 2
        %v668 = vrot.slane %v593, 2
        %v669 = vsel %vm631, %v667, %v668
        %v670 = vrot.slane %v594, 2
        %v671 = vsel %vm631, %v668, %v670
        %vm688 = vcmask 1043456
        %v689 = vrot.slane %v571, 4
        %v690 = vrot.slane %v572, 4
        %v691 = vsel %vm688, %v689, %v690
        %v692 = vrot.slane %v573, 4
        %v693 = vsel %vm688, %v690, %v692
        %v694 = vrot.slane %v574, 4
        %v695 = vrot.slane %v575, 4
        %v696 = vsel %vm688, %v694, %v695
        %v697 = vrot.slane %v576, 4
        %v698 = vsel %vm688, %v695, %v697
        %v699 = vrot.slane %v577, 4
        %v700 = vrot.slane %v578, 4
        %v701 = vsel %vm688, %v699, %v700
        %v702 = vrot.slane %v579, 4
        %v703 = vsel %vm688, %v700, %v702
        %v704 = vrot.slane %v580, 4
        %v705 = vrot.slane %v581, 4
        %v706 = vsel %vm688, %v704, %v705
        %v707 = vrot.slane %v582, 4
        %v708 = vsel %vm688, %v705, %v707
        %v709 = vrot.slane %v583, 4
        %v710 = vrot.slane %v584, 4
        %v711 = vsel %vm688, %v709, %v710
        %v712 = vrot.slane %v585, 4
        %v713 = vsel %vm688, %v710, %v712
        %v714 = vrot.slane %v586, 4
        %v715 = vrot.slane %v587, 4
        %v716 = vsel %vm688, %v714, %v715
        %v717 = vrot.slane %v588, 4
        %v718 = vsel %vm688, %v715, %v717
        %v719 = vrot.slane %v589, 4
        %v720 = vrot.slane %v590, 4
        %v721 = vsel %vm688, %v719, %v720
        %v722 = vrot.slane %v591, 4
        %v723 = vsel %vm688, %v720, %v722
        %v724 = vrot.slane %v592, 4
        %v725 = vrot.slane %v593, 4
        %v726 = vsel %vm688, %v724, %v725
        %v727 = vrot.slane %v594, 4
        %v728 = vsel %vm688, %v725, %v727
        %v751 = vrot.slane %v595, 2
        %v752 = vrot.slane %v596, 2
        %v753 = vsel %vm631, %v751, %v752
        %v754 = vrot.slane %v597, 2
        %v755 = vsel %vm631, %v752, %v754
        %v756 = vrot.slane %v598, 2
        %v757 = vrot.slane %v599, 2
        %v758 = vsel %vm631, %v756, %v757
        %v759 = vrot.slane %v600, 2
        %v760 = vsel %vm631, %v757, %v759
        %v765 = vrot.slane %v595, 4
        %v766 = vrot.slane %v596, 4
        %v767 = vsel %vm688, %v765, %v766
        %v768 = vrot.slane %v597, 4
        %v769 = vsel %vm688, %v766, %v768
        %v770 = vrot.slane %v598, 4
        %v771 = vrot.slane %v599, 4
        %v772 = vsel %vm688, %v770, %v771
        %v773 = vrot.slane %v600, 4
        %v774 = vsel %vm688, %v771, %v773
        %v785 = vrot.slane %v601, 2
        %v786 = vrot.slane %v602, 2
        %v787 = vsel %vm631, %v785, %v786
        %v788 = vrot.slane %v603, 2
        %v789 = vsel %vm631, %v786, %v788
        %v790 = vrot.slane %v604, 2
        %v791 = vrot.slane %v605, 2
        %v792 = vsel %vm631, %v790, %v791
        %v793 = vrot.slane %v606, 2
        %v794 = vsel %vm631, %v791, %v793
        %v799 = vrot.slane %v601, 4
        %v800 = vrot.slane %v602, 4
        %v801 = vsel %vm688, %v799, %v800
        %v802 = vrot.slane %v603, 4
        %v803 = vsel %vm688, %v800, %v802
        %v804 = vrot.slane %v604, 4
        %v805 = vrot.slane %v605, 4
        %v806 = vsel %vm688, %v804, %v805
        %v807 = vrot.slane %v606, 4
        %v808 = vsel %vm688, %v805, %v807
        %v813 = vld [vmem:[%s1] sm:$0xff]
        %v814 = vld [vmem:[%s1 + $0x8] sm:$0xff]
        %v815 = vld [vmem:[%s1 + $0x10] sm:$0xff]
        %v816 = vld [vmem:[%s1 + $0x18] sm:$0xff]
        %v817 = vld [vmem:[%s1 + $0x20] sm:$0xff]
        %v818 = vld [vmem:[%s1 + $0x28] sm:$0xff]
        %v819 = vld [vmem:[%s1 + $0x30] sm:$0xff]
        %v820 = vld [vmem:[%s1 + $0x38] sm:$0xff]
        %v821 = vld [vmem:[%s1 + $0x40] sm:$0xff]
        %v822 = vld [vmem:[%s1 + $0x48] sm:$0xff]
        %v823 = vld [vmem:[%s1 + $0x50] sm:$0xff]
        %v824 = vld [vmem:[%s1 + $0x58] sm:$0xff]
        %v825 = vld [vmem:[%s1 + $0x60] sm:$0xff]
        %v826 = vld [vmem:[%s1 + $0x68] sm:$0xff]
        %v827 = vld [vmem:[%s1 + $0x70] sm:$0xff]
        %v828 = vld [vmem:[%s1 + $0x78] sm:$0xff]
        %v829 = vld [vmem:[%s1 + $0x80] sm:$0xff]
        %v830 = vld [vmem:[%s1 + $0x88] sm:$0xff]
        %v831 = vld [vmem:[%s1 + $0x90] sm:$0xff]
        %v832 = vld [vmem:[%s1 + $0x98] sm:$0xff]
        %v833 = vld [vmem:[%s1 + $0xa0] sm:$0xff]
        %v834 = vld [vmem:[%s1 + $0xa8] sm:$0xff]
        %v835 = vld [vmem:[%s1 + $0xb0] sm:$0xff]
        %v836 = vld [vmem:[%s1 + $0xb8] sm:$0xff]
        %v837 = vld [vmem:[%s1 + $0xc0] sm:$0xff]
        %v838 = vld [vmem:[%s1 + $0xc8] sm:$0xff]
        %v839 = vld [vmem:[%s1 + $0xd0] sm:$0xff]
        %v840 = vld [vmem:[%s1 + $0xd8] sm:$0xff]
        %v841 = vld [vmem:[%s1 + $0xe0] sm:$0xff]
        %v842 = vld [vmem:[%s1 + $0xe8] sm:$0xff]
        %v843 = vld [vmem:[%s1 + $0xf0] sm:$0xff]
        %v844 = vld [vmem:[%s1 + $0xf8] sm:$0xff]
        %v845 = vld [vmem:[%s1 + $0x100] sm:$0xff]
        %v846 = vld [vmem:[%s1 + $0x108] sm:$0xff]
        %v847 = vld [vmem:[%s1 + $0x110] sm:$0xff]
        %v848 = vld [vmem:[%s1 + $0x118] sm:$0xff]
        %v849 = vld [vmem:[%s1 + $0x120] sm:$0xff]
        %v850 = vld [vmem:[%s1 + $0x128] sm:$0xff]
        %v851 = vld [vmem:[%s1 + $0x130] sm:$0xff]
        %v852 = vld [vmem:[%s1 + $0x138] sm:$0xff]
        %v853 = vld [vmem:[%s1 + $0x140] sm:$0xff]
        %v854 = vld [vmem:[%s1 + $0x148] sm:$0xff]
        %v855 = vld [vmem:[%s1 + $0x150] sm:$0xff]
        %v856 = vld [vmem:[%s1 + $0x158] sm:$0xff]
        %v857 = vld [vmem:[%s1 + $0x160] sm:$0xff]
        %v858 = vld [vmem:[%s1 + $0x168] sm:$0xff]
        %v859 = vld [vmem:[%s1 + $0x170] sm:$0xff]
        %v860 = vld [vmem:[%s1 + $0x178] sm:$0xff]
        %v861 = vld [vmem:[%s1 + $0x180] sm:$0xff]
        %v862 = vld [vmem:[%s1 + $0x188] sm:$0xff]
        %v863 = vld [vmem:[%s1 + $0x190] sm:$0xff]
        %v864 = vld [vmem:[%s1 + $0x198] sm:$0xff]
        %v865 = vld [vmem:[%s1 + $0x1a0] sm:$0xff]
        %v866 = vld [vmem:[%s1 + $0x1a8] sm:$0xff]
        %v867 = vld [vmem:[%s1 + $0x1b0] sm:$0xff]
        %v868 = vld [vmem:[%s1 + $0x1b8] sm:$0xff]
        %v869 = vld [vmem:[%s1 + $0x1c0] sm:$0xff]
        %v870 = vld [vmem:[%s1 + $0x1c8] sm:$0xff]
        %v871 = vld [vmem:[%s1 + $0x1d0] sm:$0xff]
        %v872 = vld [vmem:[%s1 + $0x1d8] sm:$0xff]
        %v873 = vld [vmem:[%s1 + $0x1e0] sm:$0xff]
        %v874 = vld [vmem:[%s1 + $0x1e8] sm:$0xff]
        %v875 = vld [vmem:[%s1 + $0x1f0] sm:$0xff]
        %v876 = vld [vmem:[%s1 + $0x1f8] sm:$0xff]
        %v877 = vld [vmem:[%s1 + $0x200] sm:$0xff]
        %v878 = vld [vmem:[%s1 + $0x208] sm:$0xff]
        %v879 = vld [vmem:[%s1 + $0x210] sm:$0xff]
        %v880 = vld [vmem:[%s1 + $0x218] sm:$0xff]
        %v881 = vld [vmem:[%s1 + $0x220] sm:$0xff]
        %v882 = vld [vmem:[%s1 + $0x228] sm:$0xff]
        %v883 = vld [vmem:[%s1 + $0x230] sm:$0xff]
        %v884 = vld [vmem:[%s1 + $0x238] sm:$0xff]
        %v885 = vld [vmem:[%s1 + $0x240] sm:$0xff]
        %v886 = vld [vmem:[%s1 + $0x248] sm:$0xff]
        %v887 = vld [vmem:[%s1 + $0x250] sm:$0xff]
        %v888 = vld [vmem:[%s1 + $0x258] sm:$0xff]
        %v889 = vld [vmem:[%s1 + $0x260] sm:$0xff]
        %v890 = vld [vmem:[%s1 + $0x268] sm:$0xff]
        %v891 = vld [vmem:[%s1 + $0x270] sm:$0xff]
        %v892 = vld [vmem:[%s1 + $0x278] sm:$0xff]
        %v893 = vld [vmem:[%s1 + $0x280] sm:$0xff]
        %v894 = vld [vmem:[%s1 + $0x288] sm:$0xff]
        %v895 = vld [vmem:[%s1 + $0x290] sm:$0xff]
        %v896 = vld [vmem:[%s1 + $0x298] sm:$0xff]
        %v897 = vld [vmem:[%s1 + $0x2a0] sm:$0xff]
        %v898 = vld [vmem:[%s1 + $0x2a8] sm:$0xff]
        %v899 = vld [vmem:[%s1 + $0x2b0] sm:$0xff]
        %v900 = vld [vmem:[%s1 + $0x2b8] sm:$0xff]
        %v901 = vld [vmem:[%s1 + $0x2c0] sm:$0xff]
        %v902 = vld [vmem:[%s1 + $0x2c8] sm:$0xff]
        %v903 = vld [vmem:[%s1 + $0x2d0] sm:$0xff]
        %v904 = vld [vmem:[%s1 + $0x2d8] sm:$0xff]
        %v905 = vld [vmem:[%s1 + $0x2e0] sm:$0xff]
        %v906 = vld [vmem:[%s1 + $0x2e8] sm:$0xff]
        %v907 = vld [vmem:[%s1 + $0x2f0] sm:$0xff]
        %v908 = vld [vmem:[%s1 + $0x2f8] sm:$0xff]
        %v909 = vld [vmem:[%s1 + $0x300] sm:$0xff]
        %v910 = vld [vmem:[%s1 + $0x308] sm:$0xff]
        %v911 = vld [vmem:[%s1 + $0x310] sm:$0xff]
        %v912 = vld [vmem:[%s1 + $0x318] sm:$0xff]
        %v913 = vld [vmem:[%s1 + $0x320] sm:$0xff]
        %v914 = vld [vmem:[%s1 + $0x328] sm:$0xff]
        %v915 = vld [vmem:[%s1 + $0x330] sm:$0xff]
        %v916 = vld [vmem:[%s1 + $0x338] sm:$0xff]
        %v917 = vld [vmem:[%s1 + $0x340] sm:$0xff]
        %v918 = vld [vmem:[%s1 + $0x348] sm:$0xff]
        %v919 = vld [vmem:[%s1 + $0x350] sm:$0xff]
        %v920 = vld [vmem:[%s1 + $0x358] sm:$0xff]
        %v921 = vld [vmem:[%s1 + $0x360] sm:$0xff]
        %v922 = vld [vmem:[%s1 + $0x368] sm:$0xff]
        %v923 = vld [vmem:[%s1 + $0x370] sm:$0xff]
        %v924 = vld [vmem:[%s1 + $0x378] sm:$0xff]
        %v925 = vld [vmem:[%s1 + $0x380] sm:$0xff]
        %v926 = vld [vmem:[%s1 + $0x388] sm:$0xff]
        %v927 = vld [vmem:[%s1 + $0x390] sm:$0xff]
        %v928 = vld [vmem:[%s1 + $0x398] sm:$0xff]
        %v929 = vld [vmem:[%s1 + $0x3a0] sm:$0xff]
        %v930 = vld [vmem:[%s1 + $0x3a8] sm:$0xff]
        %v931 = vld [vmem:[%s1 + $0x3b0] sm:$0xff]
        %v932 = vld [vmem:[%s1 + $0x3b8] sm:$0xff]
        %v933 = vld [vmem:[%s1 + $0x3c0] sm:$0xff]
        %v934 = vld [vmem:[%s1 + $0x3c8] sm:$0xff]
        %v935 = vld [vmem:[%s1 + $0x3d0] sm:$0xff]
        %v936 = vld [vmem:[%s1 + $0x3d8] sm:$0xff]
        %v937 = vld [vmem:[%s1 + $0x3e0] sm:$0xff]
        %v938 = vld [vmem:[%s1 + $0x3e8] sm:$0xff]
        %v939 = vld [vmem:[%s1 + $0x3f0] sm:$0xff]
        %v940 = vld [vmem:[%s1 + $0x3f8] sm:$0xff]
        %v941 = vld [vmem:[%s1 + $0x400] sm:$0xff]
        %v942 = vld [vmem:[%s1 + $0x408] sm:$0xff]
        %v943 = vld [vmem:[%s1 + $0x410] sm:$0xff]
        %v944 = vld [vmem:[%s1 + $0x418] sm:$0xff]
        %v945 = vld [vmem:[%s1 + $0x420] sm:$0xff]
        %v946 = vld [vmem:[%s1 + $0x428] sm:$0xff]
        %v947 = vld [vmem:[%s1 + $0x430] sm:$0xff]
        %v948 = vld [vmem:[%s1 + $0x438] sm:$0xff]
        %v949 = vld [vmem:[%s1 + $0x440] sm:$0xff]
        %v950 = vld [vmem:[%s1 + $0x448] sm:$0xff]
        %v951 = vld [vmem:[%s1 + $0x450] sm:$0xff]
        %v952 = vld [vmem:[%s1 + $0x458] sm:$0xff]
        %v953 = vld [vmem:[%s1 + $0x460] sm:$0xff]
        %v954 = vld [vmem:[%s1 + $0x468] sm:$0xff]
        %v955 = vld [vmem:[%s1 + $0x470] sm:$0xff]
        %v956 = vld [vmem:[%s1 + $0x478] sm:$0xff]
        %v957 = vld [vmem:[%s2] sm:$0x1]
        %v959 = vlaneseq
        %v960 = vshrl.u32 %v959, 7
        %v961 = vsub.s32 0, %v960
        %v962 = vrot.slane %v957, %v961
        %964 = vmatprep.subr.mxu0 0.0
        %965 = vmatpush1.msra.mxu0 %v828
        %966 = vmatprep.subr.mxu0 0.0
        %967 = vmatpush1.msra.mxu0 %v827
        %968 = vmatprep.subr.mxu0 0.0
        %969 = vmatpush1.msra.mxu0 %v826
        %970 = vmatprep.subr.mxu0 0.0
        %971 = vmatpush1.msra.mxu0 %v825
        %972 = vmatprep.subr.mxu0 0.0
        %973 = vmatpush1.msra.mxu0 %v824
        %974 = vmatprep.subr.mxu0 0.0
        %975 = vmatpush1.msra.mxu0 %v823
        %976 = vmatprep.subr.mxu0 0.0
        %977 = vmatpush1.msra.mxu0 %v822
        %978 = vmatprep.subr.mxu0 0.0
        %979 = vmatpush1.msra.mxu0 %v821
        %980 = vmatprep.subr.mxu0 0.0
        %981 = vmatpush1.msra.mxu0 %v820
        %982 = vmatprep.subr.mxu0 0.0
        %983 = vmatpush1.msra.mxu0 %v819
        %984 = vmatprep.subr.mxu0 0.0
        %985 = vmatpush1.msra.mxu0 %v818
        %986 = vmatprep.subr.mxu0 0.0
        %987 = vmatpush1.msra.mxu0 %v817
        %988 = vmatprep.subr.mxu0 0.0
        %989 = vmatpush1.msra.mxu0 %v816
        %990 = vmatprep.subr.mxu0 0.0
        %991 = vmatpush1.msra.mxu0 %v815
        %992 = vmatprep.subr.mxu0 0.0
        %993 = vmatpush1.msra.mxu0 %v814
        %994 = vmatprep.subr.mxu0 0.0
        %995 = vmatpush1.msra.mxu0 %v813
        %996 = vmatprep.subr.mxu0 0.0
        %997 = vmatpush2.msra.mxu0 %v844
        %998 = vmatprep.subr.mxu0 0.0
        %999 = vmatpush2.msra.mxu0 %v843
        %1000 = vmatprep.subr.mxu0 0.0
        %1001 = vmatpush2.msra.mxu0 %v842
        %1002 = vmatprep.subr.mxu0 0.0
        %1003 = vmatpush2.msra.mxu0 %v841
        %1004 = vmatprep.subr.mxu0 0.0
        %1005 = vmatpush2.msra.mxu0 %v840
        %1006 = vmatprep.subr.mxu0 0.0
        %1007 = vmatpush2.msra.mxu0 %v839
        %1008 = vmatprep.subr.mxu0 0.0
        %1009 = vmatpush2.msra.mxu0 %v838
        %1010 = vmatprep.subr.mxu0 0.0
        %1011 = vmatpush2.msra.mxu0 %v837
        %1012 = vmatprep.subr.mxu0 0.0
        %1013 = vmatpush2.msra.mxu0 %v836
        %1014 = vmatprep.subr.mxu0 0.0
        %1015 = vmatpush2.msra.mxu0 %v835
        %1016 = vmatprep.subr.mxu0 0.0
        %1017 = vmatpush2.msra.mxu0 %v834
        %1018 = vmatprep.subr.mxu0 0.0
        %1019 = vmatpush2.msra.mxu0 %v833
        %1020 = vmatprep.subr.mxu0 0.0
        %1021 = vmatpush2.msra.mxu0 %v832
        %1022 = vmatprep.subr.mxu0 0.0
        %1023 = vmatpush2.msra.mxu0 %v831
        %1024 = vmatprep.subr.mxu0 0.0
        %1025 = vmatpush2.msra.mxu0 %v830
        %1026 = vmatprep.subr.mxu0 0.0
        %1027 = vmatpush2.msra.mxu0 %v829
        %1028 = vmatprep.mubr.f32.mxu0 %v634
        %1029 = vmatmul.mubr.f32.gmra.mxu0 %v571
        %v1030 = vpop.f32.mrf.mxu0
        %v1031 = vadd.f32 %v962, %v1030
        %v1032 = vpop.f32.mrf.mxu0
        %1033 = vmatprep.mubr.f32.mxu0 %v636
        %1034 = vmatmul.mubr.f32.gmra.mxu0 %v572
        %v1035 = vpop.f32.mrf.mxu0
        %v1036 = vadd.f32 %v962, %v1035
        %v1037 = vpop.f32.mrf.mxu0
        %1038 = vmatprep.mubr.f32.mxu0 %v639
        %1039 = vmatmul.mubr.f32.gmra.mxu0 %v574
        %v1040 = vpop.f32.mrf.mxu0
        %v1041 = vadd.f32 %v962, %v1040
        %v1042 = vpop.f32.mrf.mxu0
        %1043 = vmatprep.mubr.f32.mxu0 %v641
        %1044 = vmatmul.mubr.f32.gmra.mxu0 %v575
        %v1045 = vpop.f32.mrf.mxu0
        %v1046 = vadd.f32 %v962, %v1045
        %v1047 = vpop.f32.mrf.mxu0
        %1048 = vmatprep.mubr.f32.mxu0 %v644
        %1049 = vmatmul.mubr.f32.gmra.mxu0 %v577
        %v1050 = vpop.f32.mrf.mxu0
        %v1051 = vadd.f32 %v962, %v1050
        %v1052 = vpop.f32.mrf.mxu0
        %1053 = vmatprep.mubr.f32.mxu0 %v646
        %1054 = vmatmul.mubr.f32.gmra.mxu0 %v578
        %v1055 = vpop.f32.mrf.mxu0
        %v1056 = vadd.f32 %v962, %v1055
        %v1057 = vpop.f32.mrf.mxu0
        %1058 = vmatprep.mubr.f32.mxu0 %v649
        %1059 = vmatmul.mubr.f32.gmra.mxu0 %v580
        %v1060 = vpop.f32.mrf.mxu0
        %v1061 = vadd.f32 %v962, %v1060
        %v1062 = vpop.f32.mrf.mxu0
        %1063 = vmatprep.mubr.f32.mxu0 %v651
        %1064 = vmatmul.mubr.f32.gmra.mxu0 %v581
        %v1065 = vpop.f32.mrf.mxu0
        %v1066 = vadd.f32 %v962, %v1065
        %v1067 = vpop.f32.mrf.mxu0
        %1068 = vmatprep.mubr.f32.mxu0 %v654
        %1069 = vmatmul.mubr.f32.gmra.mxu0 %v583
        %v1070 = vpop.f32.mrf.mxu0
        %v1071 = vadd.f32 %v962, %v1070
        %v1072 = vpop.f32.mrf.mxu0
        %1073 = vmatprep.mubr.f32.mxu0 %v656
        %1074 = vmatmul.mubr.f32.gmra.mxu0 %v584
        %v1075 = vpop.f32.mrf.mxu0
        %v1076 = vadd.f32 %v962, %v1075
        %v1077 = vpop.f32.mrf.mxu0
        %1078 = vmatprep.mubr.f32.mxu0 %v659
        %1079 = vmatmul.mubr.f32.gmra.mxu0 %v586
        %v1080 = vpop.f32.mrf.mxu0
        %v1081 = vadd.f32 %v962, %v1080
        %v1082 = vpop.f32.mrf.mxu0
        %1083 = vmatprep.mubr.f32.mxu0 %v661
        %1084 = vmatmul.mubr.f32.gmra.mxu0 %v587
        %v1085 = vpop.f32.mrf.mxu0
        %v1086 = vadd.f32 %v962, %v1085
        %v1087 = vpop.f32.mrf.mxu0
        %1088 = vmatprep.mubr.f32.mxu0 %v664
        %1089 = vmatmul.mubr.f32.gmra.mxu0 %v589
        %v1090 = vpop.f32.mrf.mxu0
        %v1091 = vadd.f32 %v962, %v1090
        %v1092 = vpop.f32.mrf.mxu0
        %1093 = vmatprep.mubr.f32.mxu0 %v666
        %1094 = vmatmul.mubr.f32.gmra.mxu0 %v590
        %v1095 = vpop.f32.mrf.mxu0
        %v1096 = vadd.f32 %v962, %v1095
        %v1097 = vpop.f32.mrf.mxu0
        %1098 = vmatprep.mubr.f32.mxu0 %v669
        %1099 = vmatmul.mubr.f32.gmra.mxu0 %v592
        %v1100 = vpop.f32.mrf.mxu0
        %v1101 = vadd.f32 %v962, %v1100
        %v1102 = vpop.f32.mrf.mxu0
        %1103 = vmatprep.mubr.f32.mxu0 %v671
        %1104 = vmatmul.mubr.f32.gmra.mxu0 %v593
        %v1105 = vpop.f32.mrf.mxu0
        %v1106 = vadd.f32 %v962, %v1105
        %v1107 = vpop.f32.mrf.mxu0
        %1108 = vdwg.mxu0
        %1109 = vmatprep.subr.mxu0 0.0
        %1110 = vmatpush1.msra.mxu0 %v860
        %1111 = vmatprep.subr.mxu0 0.0
        %1112 = vmatpush1.msra.mxu0 %v859
        %1113 = vmatprep.subr.mxu0 0.0
        %1114 = vmatpush1.msra.mxu0 %v858
        %1115 = vmatprep.subr.mxu0 0.0
        %1116 = vmatpush1.msra.mxu0 %v857
        %1117 = vmatprep.subr.mxu0 0.0
        %1118 = vmatpush1.msra.mxu0 %v856
        %1119 = vmatprep.subr.mxu0 0.0
        %1120 = vmatpush1.msra.mxu0 %v855
        %1121 = vmatprep.subr.mxu0 0.0
        %1122 = vmatpush1.msra.mxu0 %v854
        %1123 = vmatprep.subr.mxu0 0.0
        %1124 = vmatpush1.msra.mxu0 %v853
        %1125 = vmatprep.subr.mxu0 0.0
        %1126 = vmatpush1.msra.mxu0 %v852
        %1127 = vmatprep.subr.mxu0 0.0
        %1128 = vmatpush1.msra.mxu0 %v851
        %1129 = vmatprep.subr.mxu0 0.0
        %1130 = vmatpush1.msra.mxu0 %v850
        %1131 = vmatprep.subr.mxu0 0.0
        %1132 = vmatpush1.msra.mxu0 %v849
        %1133 = vmatprep.subr.mxu0 0.0
        %1134 = vmatpush1.msra.mxu0 %v848
        %1135 = vmatprep.subr.mxu0 0.0
        %1136 = vmatpush1.msra.mxu0 %v847
        %1137 = vmatprep.subr.mxu0 0.0
        %1138 = vmatpush1.msra.mxu0 %v846
        %1139 = vmatprep.subr.mxu0 0.0
        %1140 = vmatpush1.msra.mxu0 %v845
        %1141 = vmatprep.subr.mxu0 0.0
        %1142 = vmatpush2.msra.mxu0 %v876
        %1143 = vmatprep.subr.mxu0 0.0
        %1144 = vmatpush2.msra.mxu0 %v875
        %1145 = vmatprep.subr.mxu0 0.0
        %1146 = vmatpush2.msra.mxu0 %v874
        %1147 = vmatprep.subr.mxu0 0.0
        %1148 = vmatpush2.msra.mxu0 %v873
        %1149 = vmatprep.subr.mxu0 0.0
        %1150 = vmatpush2.msra.mxu0 %v872
        %1151 = vmatprep.subr.mxu0 0.0
        %1152 = vmatpush2.msra.mxu0 %v871
        %1153 = vmatprep.subr.mxu0 0.0
        %1154 = vmatpush2.msra.mxu0 %v870
        %1155 = vmatprep.subr.mxu0 0.0
        %1156 = vmatpush2.msra.mxu0 %v869
        %1157 = vmatprep.subr.mxu0 0.0
        %1158 = vmatpush2.msra.mxu0 %v868
        %1159 = vmatprep.subr.mxu0 0.0
        %1160 = vmatpush2.msra.mxu0 %v867
        %1161 = vmatprep.subr.mxu0 0.0
        %1162 = vmatpush2.msra.mxu0 %v866
        %1163 = vmatprep.subr.mxu0 0.0
        %1164 = vmatpush2.msra.mxu0 %v865
        %1165 = vmatprep.subr.mxu0 0.0
        %1166 = vmatpush2.msra.mxu0 %v864
        %1167 = vmatprep.subr.mxu0 0.0
        %1168 = vmatpush2.msra.mxu0 %v863
        %1169 = vmatprep.subr.mxu0 0.0
        %1170 = vmatpush2.msra.mxu0 %v862
        %1171 = vmatprep.subr.mxu0 0.0
        %1172 = vmatpush2.msra.mxu0 %v861
        %1173 = vmatprep.mubr.f32.mxu0 %v577
        %1174 = vmatmul.mubr.f32.gmra.mxu0 %v691
        %v1175 = vpop.f32.mrf.mxu0
        %v1176 = vadd.f32 %v1031, %v1175
        %v1177 = vpop.f32.mrf.mxu0
        %1178 = vmatprep.mubr.f32.mxu0 %v578
        %1179 = vmatmul.mubr.f32.gmra.mxu0 %v693
        %v1180 = vpop.f32.mrf.mxu0
        %v1181 = vadd.f32 %v1036, %v1180
        %v1182 = vpop.f32.mrf.mxu0
        %1183 = vmatprep.mubr.f32.mxu0 %v580
        %1184 = vmatmul.mubr.f32.gmra.mxu0 %v696
        %v1185 = vpop.f32.mrf.mxu0
        %v1186 = vadd.f32 %v1041, %v1185
        %v1187 = vpop.f32.mrf.mxu0
        %1188 = vmatprep.mubr.f32.mxu0 %v581
        %1189 = vmatmul.mubr.f32.gmra.mxu0 %v698
        %v1190 = vpop.f32.mrf.mxu0
        %v1191 = vadd.f32 %v1046, %v1190
        %v1192 = vpop.f32.mrf.mxu0
        %1193 = vmatprep.mubr.f32.mxu0 %v583
        %1194 = vmatmul.mubr.f32.gmra.mxu0 %v701
        %v1195 = vpop.f32.mrf.mxu0
        %v1196 = vadd.f32 %v1051, %v1195
        %v1197 = vpop.f32.mrf.mxu0
        %1198 = vmatprep.mubr.f32.mxu0 %v584
        %1199 = vmatmul.mubr.f32.gmra.mxu0 %v703
        %v1200 = vpop.f32.mrf.mxu0
        %v1201 = vadd.f32 %v1056, %v1200
        %v1202 = vpop.f32.mrf.mxu0
        %1203 = vmatprep.mubr.f32.mxu0 %v586
        %1204 = vmatmul.mubr.f32.gmra.mxu0 %v706
        %v1205 = vpop.f32.mrf.mxu0
        %v1206 = vadd.f32 %v1061, %v1205
        %v1207 = vpop.f32.mrf.mxu0
        %1208 = vmatprep.mubr.f32.mxu0 %v587
        %1209 = vmatmul.mubr.f32.gmra.mxu0 %v708
        %v1210 = vpop.f32.mrf.mxu0
        %v1211 = vadd.f32 %v1066, %v1210
        %v1212 = vpop.f32.mrf.mxu0
        %1213 = vmatprep.mubr.f32.mxu0 %v589
        %1214 = vmatmul.mubr.f32.gmra.mxu0 %v711
        %v1215 = vpop.f32.mrf.mxu0
        %v1216 = vadd.f32 %v1071, %v1215
        %v1217 = vpop.f32.mrf.mxu0
        %1218 = vmatprep.mubr.f32.mxu0 %v590
        %1219 = vmatmul.mubr.f32.gmra.mxu0 %v713
        %v1220 = vpop.f32.mrf.mxu0
        %v1221 = vadd.f32 %v1076, %v1220
        %v1222 = vpop.f32.mrf.mxu0
        %1223 = vmatprep.mubr.f32.mxu0 %v592
        %1224 = vmatmul.mubr.f32.gmra.mxu0 %v716
        %v1225 = vpop.f32.mrf.mxu0
        %v1226 = vadd.f32 %v1081, %v1225
        %v1227 = vpop.f32.mrf.mxu0
        %1228 = vmatprep.mubr.f32.mxu0 %v593
        %1229 = vmatmul.mubr.f32.gmra.mxu0 %v718
        %v1230 = vpop.f32.mrf.mxu0
        %v1231 = vadd.f32 %v1086, %v1230
        %v1232 = vpop.f32.mrf.mxu0
        %1233 = vmatprep.mubr.f32.mxu0 %v595
        %1234 = vmatmul.mubr.f32.gmra.mxu0 %v721
        %v1235 = vpop.f32.mrf.mxu0
        %v1236 = vadd.f32 %v1091, %v1235
        %v1237 = vpop.f32.mrf.mxu0
        %1238 = vmatprep.mubr.f32.mxu0 %v596
        %1239 = vmatmul.mubr.f32.gmra.mxu0 %v723
        %v1240 = vpop.f32.mrf.mxu0
        %v1241 = vadd.f32 %v1096, %v1240
        %v1242 = vpop.f32.mrf.mxu0
        %1243 = vmatprep.mubr.f32.mxu0 %v598
        %1244 = vmatmul.mubr.f32.gmra.mxu0 %v726
        %v1245 = vpop.f32.mrf.mxu0
        %v1246 = vadd.f32 %v1101, %v1245
        %v1247 = vpop.f32.mrf.mxu0
        %1248 = vmatprep.mubr.f32.mxu0 %v599
        %1249 = vmatmul.mubr.f32.gmra.mxu0 %v728
        %v1250 = vpop.f32.mrf.mxu0
        %v1251 = vadd.f32 %v1106, %v1250
        %v1252 = vpop.f32.mrf.mxu0
        %1253 = vdwg.mxu0
        %1254 = vmatprep.subr.mxu0 0.0
        %1255 = vmatpush1.msra.mxu0 %v892
        %1256 = vmatprep.subr.mxu0 0.0
        %1257 = vmatpush1.msra.mxu0 %v891
        %1258 = vmatprep.subr.mxu0 0.0
        %1259 = vmatpush1.msra.mxu0 %v890
        %1260 = vmatprep.subr.mxu0 0.0
        %1261 = vmatpush1.msra.mxu0 %v889
        %1262 = vmatprep.subr.mxu0 0.0
        %1263 = vmatpush1.msra.mxu0 %v888
        %1264 = vmatprep.subr.mxu0 0.0
        %1265 = vmatpush1.msra.mxu0 %v887
        %1266 = vmatprep.subr.mxu0 0.0
        %1267 = vmatpush1.msra.mxu0 %v886
        %1268 = vmatprep.subr.mxu0 0.0
        %1269 = vmatpush1.msra.mxu0 %v885
        %1270 = vmatprep.subr.mxu0 0.0
        %1271 = vmatpush1.msra.mxu0 %v884
        %1272 = vmatprep.subr.mxu0 0.0
        %1273 = vmatpush1.msra.mxu0 %v883
        %1274 = vmatprep.subr.mxu0 0.0
        %1275 = vmatpush1.msra.mxu0 %v882
        %1276 = vmatprep.subr.mxu0 0.0
        %1277 = vmatpush1.msra.mxu0 %v881
        %1278 = vmatprep.subr.mxu0 0.0
        %1279 = vmatpush1.msra.mxu0 %v880
        %1280 = vmatprep.subr.mxu0 0.0
        %1281 = vmatpush1.msra.mxu0 %v879
        %1282 = vmatprep.subr.mxu0 0.0
        %1283 = vmatpush1.msra.mxu0 %v878
        %1284 = vmatprep.subr.mxu0 0.0
        %1285 = vmatpush1.msra.mxu0 %v877
        %1286 = vmatprep.subr.mxu0 0.0
        %1287 = vmatpush2.msra.mxu0 %v908
        %1288 = vmatprep.subr.mxu0 0.0
        %1289 = vmatpush2.msra.mxu0 %v907
        %1290 = vmatprep.subr.mxu0 0.0
        %1291 = vmatpush2.msra.mxu0 %v906
        %1292 = vmatprep.subr.mxu0 0.0
        %1293 = vmatpush2.msra.mxu0 %v905
        %1294 = vmatprep.subr.mxu0 0.0
        %1295 = vmatpush2.msra.mxu0 %v904
        %1296 = vmatprep.subr.mxu0 0.0
        %1297 = vmatpush2.msra.mxu0 %v903
        %1298 = vmatprep.subr.mxu0 0.0
        %1299 = vmatpush2.msra.mxu0 %v902
        %1300 = vmatprep.subr.mxu0 0.0
        %1301 = vmatpush2.msra.mxu0 %v901
        %1302 = vmatprep.subr.mxu0 0.0
        %1303 = vmatpush2.msra.mxu0 %v900
        %1304 = vmatprep.subr.mxu0 0.0
        %1305 = vmatpush2.msra.mxu0 %v899
        %1306 = vmatprep.subr.mxu0 0.0
        %1307 = vmatpush2.msra.mxu0 %v898
        %1308 = vmatprep.subr.mxu0 0.0
        %1309 = vmatpush2.msra.mxu0 %v897
        %1310 = vmatprep.subr.mxu0 0.0
        %1311 = vmatpush2.msra.mxu0 %v896
        %1312 = vmatprep.subr.mxu0 0.0
        %1313 = vmatpush2.msra.mxu0 %v895
        %1314 = vmatprep.subr.mxu0 0.0
        %1315 = vmatpush2.msra.mxu0 %v894
        %1316 = vmatprep.subr.mxu0 0.0
        %1317 = vmatpush2.msra.mxu0 %v893
        %1318 = vmatprep.mubr.f32.mxu0 %v701
        %1319 = vmatmul.mubr.f32.gmra.mxu0 %v644
        %v1320 = vpop.f32.mrf.mxu0
        %v1321 = vadd.f32 %v1176, %v1320
        %v1322 = vpop.f32.mrf.mxu0
        %1323 = vmatprep.mubr.f32.mxu0 %v703
        %1324 = vmatmul.mubr.f32.gmra.mxu0 %v646
        %v1325 = vpop.f32.mrf.mxu0
        %v1326 = vadd.f32 %v1181, %v1325
        %v1327 = vpop.f32.mrf.mxu0
        %1328 = vmatprep.mubr.f32.mxu0 %v706
        %1329 = vmatmul.mubr.f32.gmra.mxu0 %v649
        %v1330 = vpop.f32.mrf.mxu0
        %v1331 = vadd.f32 %v1186, %v1330
        %v1332 = vpop.f32.mrf.mxu0
        %1333 = vmatprep.mubr.f32.mxu0 %v708
        %1334 = vmatmul.mubr.f32.gmra.mxu0 %v651
        %v1335 = vpop.f32.mrf.mxu0
        %v1336 = vadd.f32 %v1191, %v1335
        %v1337 = vpop.f32.mrf.mxu0
        %1338 = vmatprep.mubr.f32.mxu0 %v711
        %1339 = vmatmul.mubr.f32.gmra.mxu0 %v654
        %v1340 = vpop.f32.mrf.mxu0
        %v1341 = vadd.f32 %v1196, %v1340
        %v1342 = vpop.f32.mrf.mxu0
        %1343 = vmatprep.mubr.f32.mxu0 %v713
        %1344 = vmatmul.mubr.f32.gmra.mxu0 %v656
        %v1345 = vpop.f32.mrf.mxu0
        %v1346 = vadd.f32 %v1201, %v1345
        %v1347 = vpop.f32.mrf.mxu0
        %1348 = vmatprep.mubr.f32.mxu0 %v716
        %1349 = vmatmul.mubr.f32.gmra.mxu0 %v659
        %v1350 = vpop.f32.mrf.mxu0
        %v1351 = vadd.f32 %v1206, %v1350
        %v1352 = vpop.f32.mrf.mxu0
        %1353 = vmatprep.mubr.f32.mxu0 %v718
        %1354 = vmatmul.mubr.f32.gmra.mxu0 %v661
        %v1355 = vpop.f32.mrf.mxu0
        %v1356 = vadd.f32 %v1211, %v1355
        %v1357 = vpop.f32.mrf.mxu0
        %1358 = vmatprep.mubr.f32.mxu0 %v721
        %1359 = vmatmul.mubr.f32.gmra.mxu0 %v664
        %v1360 = vpop.f32.mrf.mxu0
        %v1361 = vadd.f32 %v1216, %v1360
        %v1362 = vpop.f32.mrf.mxu0
        %1363 = vmatprep.mubr.f32.mxu0 %v723
        %1364 = vmatmul.mubr.f32.gmra.mxu0 %v666
        %v1365 = vpop.f32.mrf.mxu0
        %v1366 = vadd.f32 %v1221, %v1365
        %v1367 = vpop.f32.mrf.mxu0
        %1368 = vmatprep.mubr.f32.mxu0 %v726
        %1369 = vmatmul.mubr.f32.gmra.mxu0 %v669
        %v1370 = vpop.f32.mrf.mxu0
        %v1371 = vadd.f32 %v1226, %v1370
        %v1372 = vpop.f32.mrf.mxu0
        %1373 = vmatprep.mubr.f32.mxu0 %v728
        %1374 = vmatmul.mubr.f32.gmra.mxu0 %v671
        %v1375 = vpop.f32.mrf.mxu0
        %v1376 = vadd.f32 %v1231, %v1375
        %v1377 = vpop.f32.mrf.mxu0
        %1378 = vmatprep.mubr.f32.mxu0 %v767
        %1379 = vmatmul.mubr.f32.gmra.mxu0 %v753
        %v1380 = vpop.f32.mrf.mxu0
        %v1381 = vadd.f32 %v1236, %v1380
        %v1382 = vpop.f32.mrf.mxu0
        %1383 = vmatprep.mubr.f32.mxu0 %v769
        %1384 = vmatmul.mubr.f32.gmra.mxu0 %v755
        %v1385 = vpop.f32.mrf.mxu0
        %v1386 = vadd.f32 %v1241, %v1385
        %v1387 = vpop.f32.mrf.mxu0
        %1388 = vmatprep.mubr.f32.mxu0 %v772
        %1389 = vmatmul.mubr.f32.gmra.mxu0 %v758
        %v1390 = vpop.f32.mrf.mxu0
        %v1391 = vadd.f32 %v1246, %v1390
        %v1392 = vpop.f32.mrf.mxu0
        %1393 = vmatprep.mubr.f32.mxu0 %v774
        %1394 = vmatmul.mubr.f32.gmra.mxu0 %v760
        %v1395 = vpop.f32.mrf.mxu0
        %v1396 = vadd.f32 %v1251, %v1395
        %v1397 = vpop.f32.mrf.mxu0
        %1398 = vdwg.mxu0
        %1399 = vmatprep.subr.mxu0 0.0
        %1400 = vmatpush1.msra.mxu0 %v924
        %1401 = vmatprep.subr.mxu0 0.0
        %1402 = vmatpush1.msra.mxu0 %v923
        %1403 = vmatprep.subr.mxu0 0.0
        %1404 = vmatpush1.msra.mxu0 %v922
        %1405 = vmatprep.subr.mxu0 0.0
        %1406 = vmatpush1.msra.mxu0 %v921
        %1407 = vmatprep.subr.mxu0 0.0
        %1408 = vmatpush1.msra.mxu0 %v920
        %1409 = vmatprep.subr.mxu0 0.0
        %1410 = vmatpush1.msra.mxu0 %v919
        %1411 = vmatprep.subr.mxu0 0.0
        %1412 = vmatpush1.msra.mxu0 %v918
        %1413 = vmatprep.subr.mxu0 0.0
        %1414 = vmatpush1.msra.mxu0 %v917
        %1415 = vmatprep.subr.mxu0 0.0
        %1416 = vmatpush1.msra.mxu0 %v916
        %1417 = vmatprep.subr.mxu0 0.0
        %1418 = vmatpush1.msra.mxu0 %v915
        %1419 = vmatprep.subr.mxu0 0.0
        %1420 = vmatpush1.msra.mxu0 %v914
        %1421 = vmatprep.subr.mxu0 0.0
        %1422 = vmatpush1.msra.mxu0 %v913
        %1423 = vmatprep.subr.mxu0 0.0
        %1424 = vmatpush1.msra.mxu0 %v912
        %1425 = vmatprep.subr.mxu0 0.0
        %1426 = vmatpush1.msra.mxu0 %v911
        %1427 = vmatprep.subr.mxu0 0.0
        %1428 = vmatpush1.msra.mxu0 %v910
        %1429 = vmatprep.subr.mxu0 0.0
        %1430 = vmatpush1.msra.mxu0 %v909
        %1431 = vmatprep.subr.mxu0 0.0
        %1432 = vmatpush2.msra.mxu0 %v940
        %1433 = vmatprep.subr.mxu0 0.0
        %1434 = vmatpush2.msra.mxu0 %v939
        %1435 = vmatprep.subr.mxu0 0.0
        %1436 = vmatpush2.msra.mxu0 %v938
        %1437 = vmatprep.subr.mxu0 0.0
        %1438 = vmatpush2.msra.mxu0 %v937
        %1439 = vmatprep.subr.mxu0 0.0
        %1440 = vmatpush2.msra.mxu0 %v936
        %1441 = vmatprep.subr.mxu0 0.0
        %1442 = vmatpush2.msra.mxu0 %v935
        %1443 = vmatprep.subr.mxu0 0.0
        %1444 = vmatpush2.msra.mxu0 %v934
        %1445 = vmatprep.subr.mxu0 0.0
        %1446 = vmatpush2.msra.mxu0 %v933
        %1447 = vmatprep.subr.mxu0 0.0
        %1448 = vmatpush2.msra.mxu0 %v932
        %1449 = vmatprep.subr.mxu0 0.0
        %1450 = vmatpush2.msra.mxu0 %v931
        %1451 = vmatprep.subr.mxu0 0.0
        %1452 = vmatpush2.msra.mxu0 %v930
        %1453 = vmatprep.subr.mxu0 0.0
        %1454 = vmatpush2.msra.mxu0 %v929
        %1455 = vmatprep.subr.mxu0 0.0
        %1456 = vmatpush2.msra.mxu0 %v928
        %1457 = vmatprep.subr.mxu0 0.0
        %1458 = vmatpush2.msra.mxu0 %v927
        %1459 = vmatprep.subr.mxu0 0.0
        %1460 = vmatpush2.msra.mxu0 %v926
        %1461 = vmatprep.subr.mxu0 0.0
        %1462 = vmatpush2.msra.mxu0 %v925
        %1463 = vmatprep.mubr.f32.mxu0 %v654
        %1464 = vmatmul.mubr.f32.gmra.mxu0 %v583
        %v1465 = vpop.f32.mrf.mxu0
        %v1466 = vadd.f32 %v1321, %v1465
        %v1467 = vpop.f32.mrf.mxu0
        %1468 = vmatprep.mubr.f32.mxu0 %v656
        %1469 = vmatmul.mubr.f32.gmra.mxu0 %v584
        %v1470 = vpop.f32.mrf.mxu0
        %v1471 = vadd.f32 %v1326, %v1470
        %v1472 = vpop.f32.mrf.mxu0
        %1473 = vmatprep.mubr.f32.mxu0 %v659
        %1474 = vmatmul.mubr.f32.gmra.mxu0 %v586
        %v1475 = vpop.f32.mrf.mxu0
        %v1476 = vadd.f32 %v1331, %v1475
        %v1477 = vpop.f32.mrf.mxu0
        %1478 = vmatprep.mubr.f32.mxu0 %v661
        %1479 = vmatmul.mubr.f32.gmra.mxu0 %v587
        %v1480 = vpop.f32.mrf.mxu0
        %v1481 = vadd.f32 %v1336, %v1480
        %v1482 = vpop.f32.mrf.mxu0
        %1483 = vmatprep.mubr.f32.mxu0 %v664
        %1484 = vmatmul.mubr.f32.gmra.mxu0 %v589
        %v1485 = vpop.f32.mrf.mxu0
        %v1486 = vadd.f32 %v1341, %v1485
        %v1487 = vpop.f32.mrf.mxu0
        %1488 = vmatprep.mubr.f32.mxu0 %v666
        %1489 = vmatmul.mubr.f32.gmra.mxu0 %v590
        %v1490 = vpop.f32.mrf.mxu0
        %v1491 = vadd.f32 %v1346, %v1490
        %v1492 = vpop.f32.mrf.mxu0
        %1493 = vmatprep.mubr.f32.mxu0 %v669
        %1494 = vmatmul.mubr.f32.gmra.mxu0 %v592
        %v1495 = vpop.f32.mrf.mxu0
        %v1496 = vadd.f32 %v1351, %v1495
        %v1497 = vpop.f32.mrf.mxu0
        %1498 = vmatprep.mubr.f32.mxu0 %v671
        %1499 = vmatmul.mubr.f32.gmra.mxu0 %v593
        %v1500 = vpop.f32.mrf.mxu0
        %v1501 = vadd.f32 %v1356, %v1500
        %v1502 = vpop.f32.mrf.mxu0
        %1503 = vmatprep.mubr.f32.mxu0 %v753
        %1504 = vmatmul.mubr.f32.gmra.mxu0 %v595
        %v1505 = vpop.f32.mrf.mxu0
        %v1506 = vadd.f32 %v1361, %v1505
        %v1507 = vpop.f32.mrf.mxu0
        %1508 = vmatprep.mubr.f32.mxu0 %v755
        %1509 = vmatmul.mubr.f32.gmra.mxu0 %v596
        %v1510 = vpop.f32.mrf.mxu0
        %v1511 = vadd.f32 %v1366, %v1510
        %v1512 = vpop.f32.mrf.mxu0
        %1513 = vmatprep.mubr.f32.mxu0 %v758
        %1514 = vmatmul.mubr.f32.gmra.mxu0 %v598
        %v1515 = vpop.f32.mrf.mxu0
        %v1516 = vadd.f32 %v1371, %v1515
        %v1517 = vpop.f32.mrf.mxu0
        %1518 = vmatprep.mubr.f32.mxu0 %v760
        %1519 = vmatmul.mubr.f32.gmra.mxu0 %v599
        %v1520 = vpop.f32.mrf.mxu0
        %v1521 = vadd.f32 %v1376, %v1520
        %v1522 = vpop.f32.mrf.mxu0
        %1523 = vmatprep.mubr.f32.mxu0 %v787
        %1524 = vmatmul.mubr.f32.gmra.mxu0 %v601
        %v1525 = vpop.f32.mrf.mxu0
        %v1526 = vadd.f32 %v1381, %v1525
        %v1527 = vpop.f32.mrf.mxu0
        %1528 = vmatprep.mubr.f32.mxu0 %v789
        %1529 = vmatmul.mubr.f32.gmra.mxu0 %v602
        %v1530 = vpop.f32.mrf.mxu0
        %v1531 = vadd.f32 %v1386, %v1530
        %v1532 = vpop.f32.mrf.mxu0
        %1533 = vmatprep.mubr.f32.mxu0 %v792
        %1534 = vmatmul.mubr.f32.gmra.mxu0 %v604
        %v1535 = vpop.f32.mrf.mxu0
        %v1536 = vadd.f32 %v1391, %v1535
        %v1537 = vpop.f32.mrf.mxu0
        %1538 = vmatprep.mubr.f32.mxu0 %v794
        %1539 = vmatmul.mubr.f32.gmra.mxu0 %v605
        %v1540 = vpop.f32.mrf.mxu0
        %v1541 = vadd.f32 %v1396, %v1540
        %v1542 = vpop.f32.mrf.mxu0
        %1543 = vdwg.mxu0
        %1544 = vmatprep.subr.mxu0 0.0
        %1545 = vmatpush1.msra.mxu0 %v956
        %1546 = vmatprep.subr.mxu0 0.0
        %1547 = vmatpush1.msra.mxu0 %v955
        %1548 = vmatprep.subr.mxu0 0.0
        %1549 = vmatpush1.msra.mxu0 %v954
        %1550 = vmatprep.subr.mxu0 0.0
        %1551 = vmatpush1.msra.mxu0 %v953
        %1552 = vmatprep.subr.mxu0 0.0
        %1553 = vmatpush1.msra.mxu0 %v952
        %1554 = vmatprep.subr.mxu0 0.0
        %1555 = vmatpush1.msra.mxu0 %v951
        %1556 = vmatprep.subr.mxu0 0.0
        %1557 = vmatpush1.msra.mxu0 %v950
        %1558 = vmatprep.subr.mxu0 0.0
        %1559 = vmatpush1.msra.mxu0 %v949
        %1560 = vmatprep.subr.mxu0 0.0
        %1561 = vmatpush1.msra.mxu0 %v948
        %1562 = vmatprep.subr.mxu0 0.0
        %1563 = vmatpush1.msra.mxu0 %v947
        %1564 = vmatprep.subr.mxu0 0.0
        %1565 = vmatpush1.msra.mxu0 %v946
        %1566 = vmatprep.subr.mxu0 0.0
        %1567 = vmatpush1.msra.mxu0 %v945
        %1568 = vmatprep.subr.mxu0 0.0
        %1569 = vmatpush1.msra.mxu0 %v944
        %1570 = vmatprep.subr.mxu0 0.0
        %1571 = vmatpush1.msra.mxu0 %v943
        %1572 = vmatprep.subr.mxu0 0.0
        %1573 = vmatpush1.msra.mxu0 %v942
        %1574 = vmatprep.subr.mxu0 0.0
        %1575 = vmatpush1.msra.mxu0 %v941
        %1576 = vmatprep.subr.mxu0 0.0
        %1577 = vmatpush2.msra.mxu0 0.0
        %1578 = vmatprep.subr.mxu0 0.0
        %1579 = vmatpush2.msra.mxu0 0.0
        %1580 = vmatprep.subr.mxu0 0.0
        %1581 = vmatpush2.msra.mxu0 0.0
        %1582 = vmatprep.subr.mxu0 0.0
        %1583 = vmatpush2.msra.mxu0 0.0
        %1584 = vmatprep.subr.mxu0 0.0
        %1585 = vmatpush2.msra.mxu0 0.0
        %1586 = vmatprep.subr.mxu0 0.0
        %1587 = vmatpush2.msra.mxu0 0.0
        %1588 = vmatprep.subr.mxu0 0.0
        %1589 = vmatpush2.msra.mxu0 0.0
        %1590 = vmatprep.subr.mxu0 0.0
        %1591 = vmatpush2.msra.mxu0 0.0
        %1592 = vmatprep.subr.mxu0 0.0
        %1593 = vmatpush2.msra.mxu0 0.0
        %1594 = vmatprep.subr.mxu0 0.0
        %1595 = vmatpush2.msra.mxu0 0.0
        %1596 = vmatprep.subr.mxu0 0.0
        %1597 = vmatpush2.msra.mxu0 0.0
        %1598 = vmatprep.subr.mxu0 0.0
        %1599 = vmatpush2.msra.mxu0 0.0
        %1600 = vmatprep.subr.mxu0 0.0
        %1601 = vmatpush2.msra.mxu0 0.0
        %1602 = vmatprep.subr.mxu0 0.0
        %1603 = vmatpush2.msra.mxu0 0.0
        %1604 = vmatprep.subr.mxu0 0.0
        %1605 = vmatpush2.msra.mxu0 0.0
        %1606 = vmatprep.subr.mxu0 0.0
        %1607 = vmatpush2.msra.mxu0 0.0
        %1608 = vmatprep.mubr.f32.mxu0 0.0
        %1609 = vmatmul.mubr.f32.gmra.mxu0 %v711
        %v1610 = vpop.f32.mrf.mxu0
        %v1611 = vadd.f32 %v1466, %v1610
        %v1612 = vpop.f32.mrf.mxu0
        %1613 = vmatprep.mubr.f32.mxu0 0.0
        %1614 = vmatmul.mubr.f32.gmra.mxu0 %v713
        %v1615 = vpop.f32.mrf.mxu0
        %v1616 = vadd.f32 %v1471, %v1615
        %v1617 = vpop.f32.mrf.mxu0
        %1618 = vmatprep.mubr.f32.mxu0 0.0
        %1619 = vmatmul.mubr.f32.gmra.mxu0 %v716
        %v1620 = vpop.f32.mrf.mxu0
        %v1621 = vadd.f32 %v1476, %v1620
        %v1622 = vpop.f32.mrf.mxu0
        %1623 = vmatprep.mubr.f32.mxu0 0.0
        %1624 = vmatmul.mubr.f32.gmra.mxu0 %v718
        %v1625 = vpop.f32.mrf.mxu0
        %v1626 = vadd.f32 %v1481, %v1625
        %v1627 = vpop.f32.mrf.mxu0
        %1628 = vmatprep.mubr.f32.mxu0 0.0
        %1629 = vmatmul.mubr.f32.gmra.mxu0 %v721
        %v1630 = vpop.f32.mrf.mxu0
        %v1631 = vadd.f32 %v1486, %v1630
        %v1632 = vpop.f32.mrf.mxu0
        %1633 = vmatprep.mubr.f32.mxu0 0.0
        %1634 = vmatmul.mubr.f32.gmra.mxu0 %v723
        %v1635 = vpop.f32.mrf.mxu0
        %v1636 = vadd.f32 %v1491, %v1635
        %v1637 = vpop.f32.mrf.mxu0
        %1638 = vmatprep.mubr.f32.mxu0 0.0
        %1639 = vmatmul.mubr.f32.gmra.mxu0 %v726
        %v1640 = vpop.f32.mrf.mxu0
        %v1641 = vadd.f32 %v1496, %v1640
        %v1642 = vpop.f32.mrf.mxu0
        %1643 = vmatprep.mubr.f32.mxu0 0.0
        %1644 = vmatmul.mubr.f32.gmra.mxu0 %v728
        %v1645 = vpop.f32.mrf.mxu0
        %v1646 = vadd.f32 %v1501, %v1645
        %v1647 = vpop.f32.mrf.mxu0
        %1648 = vmatprep.mubr.f32.mxu0 0.0
        %1649 = vmatmul.mubr.f32.gmra.mxu0 %v767
        %v1650 = vpop.f32.mrf.mxu0
        %v1651 = vadd.f32 %v1506, %v1650
        %v1652 = vpop.f32.mrf.mxu0
        %1653 = vmatprep.mubr.f32.mxu0 0.0
        %1654 = vmatmul.mubr.f32.gmra.mxu0 %v769
        %v1655 = vpop.f32.mrf.mxu0
        %v1656 = vadd.f32 %v1511, %v1655
        %v1657 = vpop.f32.mrf.mxu0
        %1658 = vmatprep.mubr.f32.mxu0 0.0
        %1659 = vmatmul.mubr.f32.gmra.mxu0 %v772
        %v1660 = vpop.f32.mrf.mxu0
        %v1661 = vadd.f32 %v1516, %v1660
        %v1662 = vpop.f32.mrf.mxu0
        %1663 = vmatprep.mubr.f32.mxu0 0.0
        %1664 = vmatmul.mubr.f32.gmra.mxu0 %v774
        %v1665 = vpop.f32.mrf.mxu0
        %v1666 = vadd.f32 %v1521, %v1665
        %v1667 = vpop.f32.mrf.mxu0
        %1668 = vmatprep.mubr.f32.mxu0 0.0
        %1669 = vmatmul.mubr.f32.gmra.mxu0 %v801
        %v1670 = vpop.f32.mrf.mxu0
        %v1671 = vadd.f32 %v1526, %v1670
        %v1672 = vpop.f32.mrf.mxu0
        %1673 = vmatprep.mubr.f32.mxu0 0.0
        %1674 = vmatmul.mubr.f32.gmra.mxu0 %v803
        %v1675 = vpop.f32.mrf.mxu0
        %v1676 = vadd.f32 %v1531, %v1675
        %v1677 = vpop.f32.mrf.mxu0
        %1678 = vmatprep.mubr.f32.mxu0 0.0
        %1679 = vmatmul.mubr.f32.gmra.mxu0 %v806
        %v1680 = vpop.f32.mrf.mxu0
        %v1681 = vadd.f32 %v1536, %v1680
        %v1682 = vpop.f32.mrf.mxu0
        %1683 = vmatprep.mubr.f32.mxu0 0.0
        %1684 = vmatmul.mubr.f32.gmra.mxu0 %v808
        %v1685 = vpop.f32.mrf.mxu0
        %v1686 = vadd.f32 %v1541, %v1685
        %v1687 = vpop.f32.mrf.mxu0
        %1688 = vdwg.mxu0
        %v1689 = vmax.f32 %v1611, 0.0
        %v1690 = vmax.f32 %v1616, 0.0
        %v1691 = vmax.f32 %v1621, 0.0
        %v1692 = vmax.f32 %v1626, 0.0
        %v1693 = vmax.f32 %v1631, 0.0
        %v1694 = vmax.f32 %v1636, 0.0
        %v1695 = vmax.f32 %v1641, 0.0
        %v1696 = vmax.f32 %v1646, 0.0
        %v1697 = vmax.f32 %v1651, 0.0
        %v1698 = vmax.f32 %v1656, 0.0
        %v1699 = vmax.f32 %v1661, 0.0
        %v1700 = vmax.f32 %v1666, 0.0
        %v1701 = vmax.f32 %v1671, 0.0
        %v1702 = vmax.f32 %v1676, 0.0
        %v1703 = vmax.f32 %v1681, 0.0
        %v1704 = vmax.f32 %v1686, 0.0
        %v1705 = vld [vmem:[%s3] sm:$0xff]
        %v1706 = vld [vmem:[%s3 + $0x8] sm:$0xff]
        %v1707 = vld [vmem:[%s3 + $0x10] sm:$0xff]
        %v1708 = vld [vmem:[%s3 + $0x18] sm:$0xff]
        %v1709 = vld [vmem:[%s3 + $0x20] sm:$0xff]
        %v1710 = vld [vmem:[%s3 + $0x28] sm:$0xff]
        %v1711 = vld [vmem:[%s3 + $0x30] sm:$0xff]
        %v1712 = vld [vmem:[%s3 + $0x38] sm:$0xff]
        %v1713 = vld [vmem:[%s3 + $0x40] sm:$0xff]
        %v1714 = vld [vmem:[%s3 + $0x48] sm:$0xff]
        %v1715 = vld [vmem:[%s3 + $0x50] sm:$0xff]
        %v1716 = vld [vmem:[%s3 + $0x58] sm:$0xff]
        %v1717 = vld [vmem:[%s3 + $0x60] sm:$0xff]
        %v1718 = vld [vmem:[%s3 + $0x68] sm:$0xff]
        %v1719 = vld [vmem:[%s3 + $0x70] sm:$0xff]
        %v1720 = vld [vmem:[%s3 + $0x78] sm:$0xff]
        %v1721 = vld [vmem:[%s4] sm:$0x1]
        %v1723 = vlaneseq
        %v1724 = vshrl.u32 %v1723, 7
        %v1725 = vsub.s32 0, %v1724
        %v1726 = vrot.slane %v1721, %v1725
        %1728 = vmatprep.subr.mxu0 0.0
        %1729 = vmatpush1.msra.mxu0 %v1720
        %1730 = vmatprep.subr.mxu0 0.0
        %1731 = vmatpush1.msra.mxu0 %v1719
        %1732 = vmatprep.subr.mxu0 0.0
        %1733 = vmatpush1.msra.mxu0 %v1718
        %1734 = vmatprep.subr.mxu0 0.0
        %1735 = vmatpush1.msra.mxu0 %v1717
        %1736 = vmatprep.subr.mxu0 0.0
        %1737 = vmatpush1.msra.mxu0 %v1716
        %1738 = vmatprep.subr.mxu0 0.0
        %1739 = vmatpush1.msra.mxu0 %v1715
        %1740 = vmatprep.subr.mxu0 0.0
        %1741 = vmatpush1.msra.mxu0 %v1714
        %1742 = vmatprep.subr.mxu0 0.0
        %1743 = vmatpush1.msra.mxu0 %v1713
        %1744 = vmatprep.subr.mxu0 0.0
        %1745 = vmatpush1.msra.mxu0 %v1712
        %1746 = vmatprep.subr.mxu0 0.0
        %1747 = vmatpush1.msra.mxu0 %v1711
        %1748 = vmatprep.subr.mxu0 0.0
        %1749 = vmatpush1.msra.mxu0 %v1710
        %1750 = vmatprep.subr.mxu0 0.0
        %1751 = vmatpush1.msra.mxu0 %v1709
        %1752 = vmatprep.subr.mxu0 0.0
        %1753 = vmatpush1.msra.mxu0 %v1708
        %1754 = vmatprep.subr.mxu0 0.0
        %1755 = vmatpush1.msra.mxu0 %v1707
        %1756 = vmatprep.subr.mxu0 0.0
        %1757 = vmatpush1.msra.mxu0 %v1706
        %1758 = vmatprep.subr.mxu0 0.0
        %1759 = vmatpush1.msra.mxu0 %v1705
        %1760 = vmatprep.subr.mxu0 0.0
        %1761 = vmatpush2.msra.mxu0 0.0
        %1762 = vmatprep.subr.mxu0 0.0
        %1763 = vmatpush2.msra.mxu0 0.0
        %1764 = vmatprep.subr.mxu0 0.0
        %1765 = vmatpush2.msra.mxu0 0.0
        %1766 = vmatprep.subr.mxu0 0.0
        %1767 = vmatpush2.msra.mxu0 0.0
        %1768 = vmatprep.subr.mxu0 0.0
        %1769 = vmatpush2.msra.mxu0 0.0
        %1770 = vmatprep.subr.mxu0 0.0
        %1771 = vmatpush2.msra.mxu0 0.0
        %1772 = vmatprep.subr.mxu0 0.0
        %1773 = vmatpush2.msra.mxu0 0.0
        %1774 = vmatprep.subr.mxu0 0.0
        %1775 = vmatpush2.msra.mxu0 0.0
        %1776 = vmatprep.subr.mxu0 0.0
        %1777 = vmatpush2.msra.mxu0 0.0
        %1778 = vmatprep.subr.mxu0 0.0
        %1779 = vmatpush2.msra.mxu0 0.0
        %1780 = vmatprep.subr.mxu0 0.0
        %1781 = vmatpush2.msra.mxu0 0.0
        %1782 = vmatprep.subr.mxu0 0.0
        %1783 = vmatpush2.msra.mxu0 0.0
        %1784 = vmatprep.subr.mxu0 0.0
        %1785 = vmatpush2.msra.mxu0 0.0
        %1786 = vmatprep.subr.mxu0 0.0
        %1787 = vmatpush2.msra.mxu0 0.0
        %1788 = vmatprep.subr.mxu0 0.0
        %1789 = vmatpush2.msra.mxu0 0.0
        %1790 = vmatprep.subr.mxu0 0.0
        %1791 = vmatpush2.msra.mxu0 0.0
        %1792 = vmatprep.mubr.f32.mxu0 0.0
        %1793 = vmatmul.mubr.f32.gmra.mxu0 %v1689
        %v1794 = vpop.f32.mrf.mxu0
        %v1795 = vadd.f32 %v1726, %v1794
        %v1796 = vpop.f32.mrf.mxu0
        %1797 = vmatprep.mubr.f32.mxu0 0.0
        %1798 = vmatmul.mubr.f32.gmra.mxu0 %v1690
        %v1799 = vpop.f32.mrf.mxu0
        %v1800 = vadd.f32 %v1726, %v1799
        %v1801 = vpop.f32.mrf.mxu0
        %1802 = vmatprep.mubr.f32.mxu0 0.0
        %1803 = vmatmul.mubr.f32.gmra.mxu0 %v1691
        %v1804 = vpop.f32.mrf.mxu0
        %v1805 = vadd.f32 %v1726, %v1804
        %v1806 = vpop.f32.mrf.mxu0
        %1807 = vmatprep.mubr.f32.mxu0 0.0
        %1808 = vmatmul.mubr.f32.gmra.mxu0 %v1692
        %v1809 = vpop.f32.mrf.mxu0
        %v1810 = vadd.f32 %v1726, %v1809
        %v1811 = vpop.f32.mrf.mxu0
        %1812 = vmatprep.mubr.f32.mxu0 0.0
        %1813 = vmatmul.mubr.f32.gmra.mxu0 %v1693
        %v1814 = vpop.f32.mrf.mxu0
        %v1815 = vadd.f32 %v1726, %v1814
        %v1816 = vpop.f32.mrf.mxu0
        %1817 = vmatprep.mubr.f32.mxu0 0.0
        %1818 = vmatmul.mubr.f32.gmra.mxu0 %v1694
        %v1819 = vpop.f32.mrf.mxu0
        %v1820 = vadd.f32 %v1726, %v1819
        %v1821 = vpop.f32.mrf.mxu0
        %1822 = vmatprep.mubr.f32.mxu0 0.0
        %1823 = vmatmul.mubr.f32.gmra.mxu0 %v1695
        %v1824 = vpop.f32.mrf.mxu0
        %v1825 = vadd.f32 %v1726, %v1824
        %v1826 = vpop.f32.mrf.mxu0
        %1827 = vmatprep.mubr.f32.mxu0 0.0
        %1828 = vmatmul.mubr.f32.gmra.mxu0 %v1696
        %v1829 = vpop.f32.mrf.mxu0
        %v1830 = vadd.f32 %v1726, %v1829
        %v1831 = vpop.f32.mrf.mxu0
        %1832 = vmatprep.mubr.f32.mxu0 0.0
        %1833 = vmatmul.mubr.f32.gmra.mxu0 %v1697
        %v1834 = vpop.f32.mrf.mxu0
        %v1835 = vadd.f32 %v1726, %v1834
        %v1836 = vpop.f32.mrf.mxu0
        %1837 = vmatprep.mubr.f32.mxu0 0.0
        %1838 = vmatmul.mubr.f32.gmra.mxu0 %v1698
        %v1839 = vpop.f32.mrf.mxu0
        %v1840 = vadd.f32 %v1726, %v1839
        %v1841 = vpop.f32.mrf.mxu0
        %1842 = vmatprep.mubr.f32.mxu0 0.0
        %1843 = vmatmul.mubr.f32.gmra.mxu0 %v1699
        %v1844 = vpop.f32.mrf.mxu0
        %v1845 = vadd.f32 %v1726, %v1844
        %v1846 = vpop.f32.mrf.mxu0
        %1847 = vmatprep.mubr.f32.mxu0 0.0
        %1848 = vmatmul.mubr.f32.gmra.mxu0 %v1700
        %v1849 = vpop.f32.mrf.mxu0
        %v1850 = vadd.f32 %v1726, %v1849
        %v1851 = vpop.f32.mrf.mxu0
        %1852 = vmatprep.mubr.f32.mxu0 0.0
        %1853 = vmatmul.mubr.f32.gmra.mxu0 %v1701
        %v1854 = vpop.f32.mrf.mxu0
        %v1855 = vadd.f32 %v1726, %v1854
        %v1856 = vpop.f32.mrf.mxu0
        %1857 = vmatprep.mubr.f32.mxu0 0.0
        %1858 = vmatmul.mubr.f32.gmra.mxu0 %v1702
        %v1859 = vpop.f32.mrf.mxu0
        %v1860 = vadd.f32 %v1726, %v1859
        %v1861 = vpop.f32.mrf.mxu0
        %1862 = vmatprep.mubr.f32.mxu0 0.0
        %1863 = vmatmul.mubr.f32.gmra.mxu0 %v1703
        %v1864 = vpop.f32.mrf.mxu0
        %v1865 = vadd.f32 %v1726, %v1864
        %v1866 = vpop.f32.mrf.mxu0
        %1867 = vmatprep.mubr.f32.mxu0 0.0
        %1868 = vmatmul.mubr.f32.gmra.mxu0 %v1704
        %v1869 = vpop.f32.mrf.mxu0
        %v1870 = vadd.f32 %v1726, %v1869
        %v1871 = vpop.f32.mrf.mxu0
        %1872 = vdwg.mxu0
        %v1873 = vmax.f32 %v1795, 0.0
        %v1874 = vmax.f32 %v1800, 0.0
        %v1875 = vmax.f32 %v1805, 0.0
        %v1876 = vmax.f32 %v1810, 0.0
        %v1877 = vmax.f32 %v1815, 0.0
        %v1878 = vmax.f32 %v1820, 0.0
        %v1879 = vmax.f32 %v1825, 0.0
        %v1880 = vmax.f32 %v1830, 0.0
        %v1881 = vmax.f32 %v1835, 0.0
        %v1882 = vmax.f32 %v1840, 0.0
        %v1883 = vmax.f32 %v1845, 0.0
        %v1884 = vmax.f32 %v1850, 0.0
        %v1885 = vmax.f32 %v1855, 0.0
        %v1886 = vmax.f32 %v1860, 0.0
        %v1887 = vmax.f32 %v1865, 0.0
        %v1888 = vmax.f32 %v1870, 0.0
        %v1889 = vld [vmem:[%s5] sm:$0xff]
        %v1890 = vld [vmem:[%s5 + $0x8] sm:$0xff]
        %v1891 = vld [vmem:[%s5 + $0x10] sm:$0xff]
        %v1892 = vld [vmem:[%s5 + $0x18] sm:$0xff]
        %v1893 = vld [vmem:[%s5 + $0x20] sm:$0xff]
        %v1894 = vld [vmem:[%s5 + $0x28] sm:$0xff]
        %v1895 = vld [vmem:[%s5 + $0x30] sm:$0xff]
        %v1896 = vld [vmem:[%s5 + $0x38] sm:$0xff]
        %v1897 = vld [vmem:[%s5 + $0x40] sm:$0xff]
        %v1898 = vld [vmem:[%s5 + $0x48] sm:$0xff]
        %v1899 = vld [vmem:[%s5 + $0x50] sm:$0xff]
        %v1900 = vld [vmem:[%s5 + $0x58] sm:$0xff]
        %v1901 = vld [vmem:[%s5 + $0x60] sm:$0xff]
        %v1902 = vld [vmem:[%s5 + $0x68] sm:$0xff]
        %v1903 = vld [vmem:[%s5 + $0x70] sm:$0xff]
        %v1904 = vld [vmem:[%s5 + $0x78] sm:$0xff]
        %v1905 = vld [vmem:[%s6] sm:$0x1]
        %v1907 = vlaneseq
        %v1908 = vshrl.u32 %v1907, 7
        %v1909 = vsub.s32 0, %v1908
        %v1910 = vrot.slane %v1905, %v1909
        %1912 = vmatprep.subr.mxu0 0.0
        %1913 = vmatpush1.msra.mxu0 %v1904
        %1914 = vmatprep.subr.mxu0 0.0
        %1915 = vmatpush1.msra.mxu0 %v1903
        %1916 = vmatprep.subr.mxu0 0.0
        %1917 = vmatpush1.msra.mxu0 %v1902
        %1918 = vmatprep.subr.mxu0 0.0
        %1919 = vmatpush1.msra.mxu0 %v1901
        %1920 = vmatprep.subr.mxu0 0.0
        %1921 = vmatpush1.msra.mxu0 %v1900
        %1922 = vmatprep.subr.mxu0 0.0
        %1923 = vmatpush1.msra.mxu0 %v1899
        %1924 = vmatprep.subr.mxu0 0.0
        %1925 = vmatpush1.msra.mxu0 %v1898
        %1926 = vmatprep.subr.mxu0 0.0
        %1927 = vmatpush1.msra.mxu0 %v1897
        %1928 = vmatprep.subr.mxu0 0.0
        %1929 = vmatpush1.msra.mxu0 %v1896
        %1930 = vmatprep.subr.mxu0 0.0
        %1931 = vmatpush1.msra.mxu0 %v1895
        %1932 = vmatprep.subr.mxu0 0.0
        %1933 = vmatpush1.msra.mxu0 %v1894
        %1934 = vmatprep.subr.mxu0 0.0
        %1935 = vmatpush1.msra.mxu0 %v1893
        %1936 = vmatprep.subr.mxu0 0.0
        %1937 = vmatpush1.msra.mxu0 %v1892
        %1938 = vmatprep.subr.mxu0 0.0
        %1939 = vmatpush1.msra.mxu0 %v1891
        %1940 = vmatprep.subr.mxu0 0.0
        %1941 = vmatpush1.msra.mxu0 %v1890
        %1942 = vmatprep.subr.mxu0 0.0
        %1943 = vmatpush1.msra.mxu0 %v1889
        %1944 = vmatprep.subr.mxu0 0.0
        %1945 = vmatpush2.msra.mxu0 0.0
        %1946 = vmatprep.subr.mxu0 0.0
        %1947 = vmatpush2.msra.mxu0 0.0
        %1948 = vmatprep.subr.mxu0 0.0
        %1949 = vmatpush2.msra.mxu0 0.0
        %1950 = vmatprep.subr.mxu0 0.0
        %1951 = vmatpush2.msra.mxu0 0.0
        %1952 = vmatprep.subr.mxu0 0.0
        %1953 = vmatpush2.msra.mxu0 0.0
        %1954 = vmatprep.subr.mxu0 0.0
        %1955 = vmatpush2.msra.mxu0 0.0
        %1956 = vmatprep.subr.mxu0 0.0
        %1957 = vmatpush2.msra.mxu0 0.0
        %1958 = vmatprep.subr.mxu0 0.0
        %1959 = vmatpush2.msra.mxu0 0.0
        %1960 = vmatprep.subr.mxu0 0.0
        %1961 = vmatpush2.msra.mxu0 0.0
        %1962 = vmatprep.subr.mxu0 0.0
        %1963 = vmatpush2.msra.mxu0 0.0
        %1964 = vmatprep.subr.mxu0 0.0
        %1965 = vmatpush2.msra.mxu0 0.0
        %1966 = vmatprep.subr.mxu0 0.0
        %1967 = vmatpush2.msra.mxu0 0.0
        %1968 = vmatprep.subr.mxu0 0.0
        %1969 = vmatpush2.msra.mxu0 0.0
        %1970 = vmatprep.subr.mxu0 0.0
        %1971 = vmatpush2.msra.mxu0 0.0
        %1972 = vmatprep.subr.mxu0 0.0
        %1973 = vmatpush2.msra.mxu0 0.0
        %1974 = vmatprep.subr.mxu0 0.0
        %1975 = vmatpush2.msra.mxu0 0.0
        %1976 = vmatprep.mubr.f32.mxu0 0.0
        %1977 = vmatmul.mubr.f32.gmra.mxu0 %v1873
        %v1978 = vpop.f32.mrf.mxu0
        %v1979 = vadd.f32 %v1910, %v1978
        %v1980 = vpop.f32.mrf.mxu0
        %1981 = vmatprep.mubr.f32.mxu0 0.0
        %1982 = vmatmul.mubr.f32.gmra.mxu0 %v1874
        %v1983 = vpop.f32.mrf.mxu0
        %v1984 = vadd.f32 %v1910, %v1983
        %v1985 = vpop.f32.mrf.mxu0
        %1986 = vmatprep.mubr.f32.mxu0 0.0
        %1987 = vmatmul.mubr.f32.gmra.mxu0 %v1875
        %v1988 = vpop.f32.mrf.mxu0
        %v1989 = vadd.f32 %v1910, %v1988
        %v1990 = vpop.f32.mrf.mxu0
        %1991 = vmatprep.mubr.f32.mxu0 0.0
        %1992 = vmatmul.mubr.f32.gmra.mxu0 %v1876
        %v1993 = vpop.f32.mrf.mxu0
        %v1994 = vadd.f32 %v1910, %v1993
        %v1995 = vpop.f32.mrf.mxu0
        %1996 = vmatprep.mubr.f32.mxu0 0.0
        %1997 = vmatmul.mubr.f32.gmra.mxu0 %v1877
        %v1998 = vpop.f32.mrf.mxu0
        %v1999 = vadd.f32 %v1910, %v1998
        %v2000 = vpop.f32.mrf.mxu0
        %2001 = vmatprep.mubr.f32.mxu0 0.0
        %2002 = vmatmul.mubr.f32.gmra.mxu0 %v1878
        %v2003 = vpop.f32.mrf.mxu0
        %v2004 = vadd.f32 %v1910, %v2003
        %v2005 = vpop.f32.mrf.mxu0
        %2006 = vmatprep.mubr.f32.mxu0 0.0
        %2007 = vmatmul.mubr.f32.gmra.mxu0 %v1879
        %v2008 = vpop.f32.mrf.mxu0
        %v2009 = vadd.f32 %v1910, %v2008
        %v2010 = vpop.f32.mrf.mxu0
        %2011 = vmatprep.mubr.f32.mxu0 0.0
        %2012 = vmatmul.mubr.f32.gmra.mxu0 %v1880
        %v2013 = vpop.f32.mrf.mxu0
        %v2014 = vadd.f32 %v1910, %v2013
        %v2015 = vpop.f32.mrf.mxu0
        %2016 = vmatprep.mubr.f32.mxu0 0.0
        %2017 = vmatmul.mubr.f32.gmra.mxu0 %v1881
        %v2018 = vpop.f32.mrf.mxu0
        %v2019 = vadd.f32 %v1910, %v2018
        %v2020 = vpop.f32.mrf.mxu0
        %2021 = vmatprep.mubr.f32.mxu0 0.0
        %2022 = vmatmul.mubr.f32.gmra.mxu0 %v1882
        %v2023 = vpop.f32.mrf.mxu0
        %v2024 = vadd.f32 %v1910, %v2023
        %v2025 = vpop.f32.mrf.mxu0
        %2026 = vmatprep.mubr.f32.mxu0 0.0
        %2027 = vmatmul.mubr.f32.gmra.mxu0 %v1883
        %v2028 = vpop.f32.mrf.mxu0
        %v2029 = vadd.f32 %v1910, %v2028
        %v2030 = vpop.f32.mrf.mxu0
        %2031 = vmatprep.mubr.f32.mxu0 0.0
        %2032 = vmatmul.mubr.f32.gmra.mxu0 %v1884
        %v2033 = vpop.f32.mrf.mxu0
        %v2034 = vadd.f32 %v1910, %v2033
        %v2035 = vpop.f32.mrf.mxu0
        %2036 = vmatprep.mubr.f32.mxu0 0.0
        %2037 = vmatmul.mubr.f32.gmra.mxu0 %v1885
        %v2038 = vpop.f32.mrf.mxu0
        %v2039 = vadd.f32 %v1910, %v2038
        %v2040 = vpop.f32.mrf.mxu0
        %2041 = vmatprep.mubr.f32.mxu0 0.0
        %2042 = vmatmul.mubr.f32.gmra.mxu0 %v1886
        %v2043 = vpop.f32.mrf.mxu0
        %v2044 = vadd.f32 %v1910, %v2043
        %v2045 = vpop.f32.mrf.mxu0
        %2046 = vmatprep.mubr.f32.mxu0 0.0
        %2047 = vmatmul.mubr.f32.gmra.mxu0 %v1887
        %v2048 = vpop.f32.mrf.mxu0
        %v2049 = vadd.f32 %v1910, %v2048
        %v2050 = vpop.f32.mrf.mxu0
        %2051 = vmatprep.mubr.f32.mxu0 0.0
        %2052 = vmatmul.mubr.f32.gmra.mxu0 %v1888
        %v2053 = vpop.f32.mrf.mxu0
        %v2054 = vadd.f32 %v1910, %v2053
        %v2055 = vpop.f32.mrf.mxu0
        %2056 = vdwg.mxu0
        %2057 = vst [vmem:[%s244] sm:$0xff] %v1979
        %2058 = vst [vmem:[%s244 + $0x8] sm:$0xff] %v1984
        %2059 = vst [vmem:[%s244 + $0x10] sm:$0xff] %v1989
        %2060 = vst [vmem:[%s244 + $0x18] sm:$0xff] %v1994
        %2061 = vst [vmem:[%s244 + $0x20] sm:$0xff] %v1999
        %2062 = vst [vmem:[%s244 + $0x28] sm:$0xff] %v2004
        %2063 = vst [vmem:[%s244 + $0x30] sm:$0xff] %v2009
        %2064 = vst [vmem:[%s244 + $0x38] sm:$0xff] %v2014
        %2065 = vst [vmem:[%s244 + $0x40] sm:$0xff] %v2019
        %2066 = vst [vmem:[%s244 + $0x48] sm:$0xff] %v2024
        %2067 = vst [vmem:[%s244 + $0x50] sm:$0xff] %v2029
        %2068 = vst [vmem:[%s244 + $0x58] sm:$0xff] %v2034
        %2069 = vst [vmem:[%s244 + $0x60] sm:$0xff] %v2039
        %2070 = vst [vmem:[%s244 + $0x68] sm:$0xff] %v2044
        %2071 = vst [vmem:[%s244 + $0x70] sm:$0xff] %v2049
        %2072 = vst [vmem:[%s244 + $0x78] sm:$0xff] %v2054
        %s2073 = sand.u32 %s169, 1
        %s2074 = scalar_lea.sflag [#allocation5], %s2073
        %s2075 = sand.u32 %s169, 1
        %s2076 = smul.addr %s2075, 128
        %s2077 = scalar_lea.vmem [#allocation4], %s2076
        // Predicated region
        $region127: #{tpu_custom_call.1} parent=43 // pred_check
          %p2078 = pneg %p179
        $region128: #{tpu_custom_call.1} parent=43 // pred_check_branch
          %2080 = sbr.rel (%p2078) target = $region130
        $region129: #{tpu_custom_call.1} parent=43 // pred_region
          %s2081 = smul.u32 8, %s26
          %s2083 = ssub.s32 2048, 2048
          %2084 = vsyncadd %s2074, %s2083
          %s2085 = smul.addr %s2081, 2
          %s2086 = smul.addr %s25, 32
          %s2087 = sadd.s32 %s2085, %s2086
          %s2088 = smul.addr %s2087, 128
          %s2089 = scalar_lea.hbm %s7, %s2088
          %s2090 = sshll.u32 %s2077, 4
          %s2091 = int_to_ptr.vmem [resolvable:$true] %s2090
          %2096 = dma.vmem_to_hbm [thread:$0]  %s2091, 2048, %s2089, %s2074, 128, 128, 8
        $region130: #{tpu_custom_call.1} parent=43 // pred_fallthru
          _
      $region44: #{tpu_custom_call.1} parent=5 // pred_fallthru
        _
      %p2097 = scmp.le.s32.totalorder 2, %s16
      // Predicated region
      $region131: #{tpu_custom_call.1} parent=5 // pred_check
        %p2098 = pneg %p2097
      $region132: #{tpu_custom_call.1} parent=5 // pred_check_branch
        %2100 = sbr.rel (%p2098) target = $region134
      $region133: #{tpu_custom_call.1} parent=5 // pred_region
        %s2101 = ssub.s32 %s16, 2
        // Predicated region
        $region135: #{tpu_custom_call.1} parent=133 // pred_check
          %p2102 = pneg %p185
        $region136: #{tpu_custom_call.1} parent=133 // pred_check_branch
          %2104 = sbr.rel (%p2102) target = $region138
        $region137: #{tpu_custom_call.1} parent=133 // pred_region
          %s2105 = sand.u32 %s170, 1
          %s2106 = scalar_lea.sflag [#allocation5], %s2105
          %s2107 = sand.u32 %s170, 1
          %s2108 = smul.addr %s2107, 128
          %s2109 = scalar_lea.vmem [#allocation4], %s2108
          %2110 = dma.done %s2106, 2048
        $region138: #{tpu_custom_call.1} parent=133 // pred_fallthru
          _
      $region134: #{tpu_custom_call.1} parent=5 // pred_fallthru
        _
    $region6: #{tpu_custom_call.1} parent=1 // loop_footer
      %s20 = sadd.s32 1, %s16
    $region7: #{tpu_custom_call.1} parent=1 // loop_footer_branch
      %15 = sbr.rel target = $region3
    $region8: #{tpu_custom_call.1} parent=1 // loop_exit
      _
    %2111 = vsyncpa [#allocation5], 1
    %s2112 = scalar_lea.sflag [#allocation5], 1
    %2113 = vsyncpa %s2112, 1
  %2114 = vsyncmov [#allocation3]
  %s2115 = vpop.sfrf %2114
  %p2116 = scmp.eq.s32.totalorder %s2115, 0
  %p2117 = pneg %p2116
  %2119 = shalt.err (%p2117)
  %s2120 = scalar_lea.sflag [#allocation3], 1
  %2121 = vsyncmov %s2120
  %s2122 = vpop.sfrf %2121
  %p2123 = scmp.eq.s32.totalorder %s2122, 0
  %p2124 = pneg %p2123
  %2126 = shalt.err (%p2124)

</llo_original>
